<compile_context>
chip_gen: v6e
topology: v6e:2x2x1
jax: 0.10.0
libtpu: 0.0.40
codegen_flags: <defaults>
</compile_context>

<pallas_src>
import functools

import jax
import jax.numpy as jnp
import numpy as np
from jax.experimental import pallas as pl
from jax.experimental.pallas import tpu as pltpu


def _build_conv_masks(H, W, K):
    """Implicit zero-padding masks for the flat (H*W,) layout (trace time).

    Row j     (j in [0,K)): column-validity mask for tap offset dj = j - K//2.
    Row K + i (i in [0,K)): row-validity mask    for tap offset di = i - K//2.
    """
    pad = K // 2
    xs = np.arange(W)
    ys = np.arange(H)
    col = np.stack(
        [np.tile(((xs + (j - pad)) >= 0) & ((xs + (j - pad)) < W), H)
         for j in range(K)])
    row = np.stack(
        [np.repeat(((ys + (i - pad)) >= 0) & ((ys + (i - pad)) < H), W)
         for i in range(K)])
    return jnp.asarray(np.concatenate([col, row], axis=0), dtype=jnp.float32)


def _choose_blocks(N, C, HW, itemsize, budget_bytes=2 << 20):
    """Pick (block_n, block_c) from a VMEM budget.

    Input block ~budget_bytes (double-buffered by the pipeline), block_c a
    multiple of 8 (or all of C) for sublane tiling, and >= min(N, 8) grid
    steps along N so DMA overlaps compute and both TensorCores stay busy.
    """
    # Channel (reduction) block.
    bc = C
    for d in range(C, 0, -1):
        if (C % d == 0 and (d % 8 == 0 or d == C)
                and d * HW * itemsize <= budget_bytes):
            bc = d
            break
    # Batch block.
    min_steps = min(N, 8)
    bn = 1
    for d in range(N, 0, -1):
        if (N % d == 0 and d * bc * HW * itemsize <= budget_bytes
                and N // d >= min_steps):
            bn = d
            break
    return bn, bc


def _spatial_attention_kernel(w_ref, mask_ref, x_ref, o_ref, sum_sc, max_sc,
                              *, K, W, C):
    """One (batch-block, channel-block) grid step.

    w_ref:    SMEM (2*K*K,) f32   conv weights, grid-invariant.
    mask_ref: VMEM (2*K, HW) f32  padding masks, grid-invariant.
    x_ref:    VMEM (bn, bc, HW)   lane-dense input block.
    o_ref:    VMEM (bn, 1, HW)    lane-dense output block (constant over c).
    sum_sc / max_sc: VMEM (bn, HW) f32 running channel reductions.
    """
    B, _, HW = x_ref.shape
    pad = K // 2
    c = pl.program_id(1)

    # ---- running channel reductions (C is the reduction grid axis) ---------
    @pl.when(c == 0)
    def _():
        sum_sc[...] = jnp.zeros_like(sum_sc)
        max_sc[...] = jnp.full_like(max_sc, -jnp.inf)

    xb = x_ref[...].astype(jnp.float32)                    # single VMEM read
    # TODO(synk): if profiling shows VALU saturated at large block_c, offload
    # this running sum to the idle MXU via a ones(1, block_c) contraction.
    sum_sc[...] = sum_sc[...] + jnp.sum(xb, axis=1)
    max_sc[...] = jnp.maximum(max_sc[...], jnp.max(xb, axis=1))

    # ---- 7x7 conv + sigmoid only after all channel blocks were reduced -----
    @pl.when(c == pl.num_programs(1) - 1)
    def _():
        avg = sum_sc[...] * (1.0 / C)                      # (B, HW)
        mx = max_sc[...]                                   # (B, HW)

        masks = mask_ref[...]                              # (2K, HW), one load
        col_mask = [masks[j:j + 1, :] for j in range(K)]   # shared avg/max
        row_mask = [masks[K + i:K + i + 1, :] for i in range(K)]

        # Hoist all 98 SMEM scalar weight reads out of the MAC loops.
        w_avg = [w_ref[t] for t in range(K * K)]
        w_max = [w_ref[K * K + t] for t in range(K * K)]

        # shifted[p] = v[p + d] == roll(v, -d)[p]; contributions that would
        # fall outside the image (Conv2d zero padding) are zeroed by the
        # masks, so circular wrap from the roll is harmless.
        def col_shift(v, dj):
            sh = (-dj) % HW
            return v if sh == 0 else pltpu.roll(v, sh, 1)  # XLU lane roll

        # 7 column-shifted copies per map, reused across all 7 rows.
        # TODO(synk): for large H*W (e.g. 56x56) these 14 maps spill vregs;
        # process HW in lane-axis chunks with a +-pad column halo instead.
        avg_j = [col_shift(avg, j - pad) * col_mask[j] for j in range(K)]
        mx_j = [col_shift(mx, j - pad) * col_mask[j] for j in range(K)]

        acc = jnp.zeros((B, HW), jnp.float32)
        for i in range(K):
            row = jnp.zeros((B, HW), jnp.float32)
            for j in range(K):                             # 98 VPU MACs
                row = (row
                       + w_avg[i * K + j] * avg_j[j]       # channel 0: avg
                       + w_max[i * K + j] * mx_j[j])       # channel 1: max
            di = i - pad
            sh = (-di * W) % HW
            row = row if sh == 0 else pltpu.roll(row, sh, 1)  # 1 row roll / i
            acc = acc + row_mask[i] * row

        # Kept as (bn, 1, HW): last two block dims are full dims (always
        # legal).  A flat (N, HW) output would make the store sublane-dense
        # but requires block_n to be a multiple of 8.
        o_ref[:, 0, :] = jax.nn.sigmoid(acc).astype(o_ref.dtype)


def spatial_attention(x, weight, kernel_size=7, block_n=None, block_c=None):
    """x: (N, C, H, W).  weight: (1, 2, K, K) conv weight (no bias)."""
    N, C, H, W = x.shape
    K = kernel_size
    HW = H * W

    bn, bc = _choose_blocks(N, C, HW, np.dtype(x.dtype).itemsize)
    if block_n is not None:
        bn = block_n
    if block_c is not None:
        bc = block_c
    assert N % bn == 0 and C % bc == 0, "block sizes must divide (N, C)"

    x_flat = x.reshape(N, C, HW)                        # lane-dense HW axis
    w_flat = weight.reshape(-1).astype(jnp.float32)     # (2*K*K,) SMEM scalars
    masks = _build_conv_masks(H, W, K)                  # (2K, HW) f32

    kernel = functools.partial(_spatial_attention_kernel, K=K, W=W, C=C)

    out_flat = pl.pallas_call(
        kernel,
        out_shape=jax.ShapeDtypeStruct((N, 1, HW), x.dtype),
        grid_spec=pltpu.PrefetchScalarGridSpec(
            num_scalar_prefetch=0,
            grid=(N // bn, C // bc),                    # reduction axis last
            in_specs=[
                # Grid-invariant SMEM weights: fetched once, resident for all
                # grid steps (per-tap scalar reads in the kernel).
                pl.BlockSpec(memory_space=pltpu.MemorySpace.SMEM),
                # Grid-invariant padding masks (block index never changes, so
                # the pipeline does not re-fetch them).
                pl.BlockSpec((2 * K, HW), lambda n, c: (0, 0)),
                pl.BlockSpec((bn, bc, HW), lambda n, c: (n, c, 0)),
            ],
            # Output block constant over the C axis: written only on the last
            # channel step (accumulator pattern).
            out_specs=pl.BlockSpec((bn, 1, HW), lambda n, c: (n, 0, 0)),
            scratch_shapes=[pltpu.VMEM((bn, HW), jnp.float32),
                            pltpu.VMEM((bn, HW), jnp.float32)],
        ),
        compiler_params=pltpu.CompilerParams(
            dimension_semantics=("parallel", "arbitrary"),
            vmem_limit_bytes=32 * 1024 * 1024),
    )(w_flat, masks, x_flat)

    return out_flat.reshape(N, 1, H, W)


def spatial_attention_reference(x, weight):
    avg = jnp.mean(x, axis=1, keepdims=True)
    mx = jnp.max(x, axis=1, keepdims=True)
    cat = jnp.concatenate([avg, mx], axis=1)
    out = jax.lax.conv_general_dilated(
        cat, weight, window_strides=(1, 1), padding="SAME",
        dimension_numbers=("NCHW", "OIHW", "NCHW"))
    return jax.nn.sigmoid(out)


if __name__ == "__main__":
    key = jax.random.PRNGKey(0)
    kx, kw = jax.random.split(key)

    N, C, H, W = 2, 4, 16, 16
    K = 7

    x = jax.random.normal(kx, (N, C, H, W), dtype=jnp.float32)

    # Conv2d(2, 1, 7, bias=False) weight, kaiming-uniform-style bound.
    bound = 1.0 / (2 * K * K) ** 0.5
    weight = jax.random.uniform(kw, (1, 2, K, K), jnp.float32, -bound, bound)

    out = spatial_attention(x, weight, kernel_size=K)
    out = jax.block_until_ready(out)

    ref = spatial_attention_reference(x, weight)
    assert out.shape == (N, 1, H, W)
    assert jnp.allclose(out, ref, atol=1e-5, rtol=1e-5), "mismatch vs reference"

    print("KERNEL_OK")
</pallas_src>

<mosaic_0001>
module attributes {stable_mosaic.version = 11 : i64} {
  func.func @_spatial_attention_kernel(%arg0: i32, %arg1: i32, %arg2: memref<98xf32, #tpu.memory_space<smem>>, %arg3: memref<14x256xf32, #tpu.memory_space<vmem>>, %arg4: memref<1x4x256xf32, #tpu.memory_space<vmem>>, %arg5: memref<1x1x256xf32, #tpu.memory_space<vmem>>, %arg6: memref<1x256xf32, #tpu.memory_space<vmem>>, %arg7: memref<1x256xf32, #tpu.memory_space<vmem>>) attributes {dimension_semantics = [#tpu.dimension_semantics<parallel>, #tpu.dimension_semantics<arbitrary>], iteration_bounds = array<i64: 2, 1>, scalar_prefetch = 0 : i64, scratch_operands = 2 : i64, tpu.core_type = #tpu.core_type<tc>, window_params = [{transform_indices = @transform_0, window_bounds = array<i64: 98>}, {pipeline_mode = #tpu.pipeline_mode<synchronous>, transform_indices = @transform_1, window_bounds = array<i64: 14, 256>}, {transform_indices = @transform_2, window_bounds = array<i64: 1, 4, 256>}, {transform_indices = @transform_3, window_bounds = array<i64: 1, 1, 256>}]} {
    %c0_i32 = arith.constant 0 : i32
    %0 = arith.cmpi eq, %arg1, %c0_i32 : i32
    %1 = arith.extui %0 : i1 to i32
    %c0_i32_0 = arith.constant 0 : i32
    %2 = arith.cmpi ne, %1, %c0_i32_0 : i32
    scf.if %2 {
      %cst_14 = arith.constant 0.000000e+00 : f32
      %15 = vector.broadcast %cst_14 : f32 to vector<1x256xf32>
      %c0_15 = arith.constant 0 : index
      %c0_16 = arith.constant 0 : index
      %16 = vector.load %arg6[%c0_15, %c0_16] : memref<1x256xf32, #tpu.memory_space<vmem>>, vector<1x256xf32>
      tpu.vector_store %arg6[%c0_15, %c0_16], %15 {strides = array<i32>} : memref<1x256xf32, #tpu.memory_space<vmem>>, vector<1x256xf32>,
      %cst_17 = arith.constant 0xFF800000 : f32
      %17 = vector.broadcast %cst_17 : f32 to vector<1x256xf32>
      %c0_18 = arith.constant 0 : index
      %c0_19 = arith.constant 0 : index
      %18 = vector.load %arg7[%c0_18, %c0_19] : memref<1x256xf32, #tpu.memory_space<vmem>>, vector<1x256xf32>
      tpu.vector_store %arg7[%c0_18, %c0_19], %17 {strides = array<i32>} : memref<1x256xf32, #tpu.memory_space<vmem>>, vector<1x256xf32>,
    } else {
    }
    %c0 = arith.constant 0 : index
    %c0_1 = arith.constant 0 : index
    %c0_2 = arith.constant 0 : index
    %3 = vector.load %arg4[%c0, %c0_1, %c0_2] : memref<1x4x256xf32, #tpu.memory_space<vmem>>, vector<1x4x256xf32>
    %c0_3 = arith.constant 0 : index
    %c0_4 = arith.constant 0 : index
    %4 = vector.load %arg6[%c0_3, %c0_4] : memref<1x256xf32, #tpu.memory_space<vmem>>, vector<1x256xf32>
    %cst = arith.constant dense<0.000000e+00> : vector<1x256xf32>
    %5 = vector.multi_reduction <add>, %3, %cst [1] : vector<1x4x256xf32> to vector<1x256xf32>
    %6 = arith.addf %4, %5 : vector<1x256xf32>
    %c0_5 = arith.constant 0 : index
    %c0_6 = arith.constant 0 : index
    %7 = vector.load %arg6[%c0_5, %c0_6] : memref<1x256xf32, #tpu.memory_space<vmem>>, vector<1x256xf32>
    tpu.vector_store %arg6[%c0_5, %c0_6], %6 {strides = array<i32>} : memref<1x256xf32, #tpu.memory_space<vmem>>, vector<1x256xf32>,
    %c0_7 = arith.constant 0 : index
    %c0_8 = arith.constant 0 : index
    %8 = vector.load %arg7[%c0_7, %c0_8] : memref<1x256xf32, #tpu.memory_space<vmem>>, vector<1x256xf32>
    %cst_9 = arith.constant dense<0xFF800000> : vector<1x256xf32>
    %9 = vector.multi_reduction <maximumf>, %3, %cst_9 [1] : vector<1x4x256xf32> to vector<1x256xf32>
    %10 = arith.maximumf %8, %9 : vector<1x256xf32>
    %c0_10 = arith.constant 0 : index
    %c0_11 = arith.constant 0 : index
    %11 = vector.load %arg7[%c0_10, %c0_11] : memref<1x256xf32, #tpu.memory_space<vmem>>, vector<1x256xf32>
    tpu.vector_store %arg7[%c0_10, %c0_11], %10 {strides = array<i32>} : memref<1x256xf32, #tpu.memory_space<vmem>>, vector<1x256xf32>,
    %c0_i32_12 = arith.constant 0 : i32
    %12 = arith.cmpi eq, %arg1, %c0_i32_12 : i32
    %13 = arith.extui %12 : i1 to i32
    %c0_i32_13 = arith.constant 0 : i32
    %14 = arith.cmpi ne, %13, %c0_i32_13 : i32
    scf.if %14 {
      %c0_14 = arith.constant 0 : index
      %c0_15 = arith.constant 0 : index
      %15 = vector.load %arg6[%c0_14, %c0_15] : memref<1x256xf32, #tpu.memory_space<vmem>>, vector<1x256xf32>
      %cst_16 = arith.constant 2.500000e-01 : f32
      %16 = vector.broadcast %cst_16 : f32 to vector<1x256xf32>
      %17 = arith.mulf %15, %16 : vector<1x256xf32>
      %c0_17 = arith.constant 0 : index
      %c0_18 = arith.constant 0 : index
      %18 = vector.load %arg7[%c0_17, %c0_18] : memref<1x256xf32, #tpu.memory_space<vmem>>, vector<1x256xf32>
      %c0_19 = arith.constant 0 : index
      %c0_20 = arith.constant 0 : index
      %19 = vector.load %arg3[%c0_19, %c0_20] : memref<14x256xf32, #tpu.memory_space<vmem>>, vector<14x256xf32>
      %20 = vector.extract_strided_slice %19 {offsets = [0, 0], sizes = [1, 256], strides = [1, 1]} : vector<14x256xf32> to vector<1x256xf32>
      %21 = vector.extract_strided_slice %19 {offsets = [1, 0], sizes = [1, 256], strides = [1, 1]} : vector<14x256xf32> to vector<1x256xf32>
      %22 = vector.extract_strided_slice %19 {offsets = [2, 0], sizes = [1, 256], strides = [1, 1]} : vector<14x256xf32> to vector<1x256xf32>
      %23 = vector.extract_strided_slice %19 {offsets = [3, 0], sizes = [1, 256], strides = [1, 1]} : vector<14x256xf32> to vector<1x256xf32>
      %24 = vector.extract_strided_slice %19 {offsets = [4, 0], sizes = [1, 256], strides = [1, 1]} : vector<14x256xf32> to vector<1x256xf32>
      %25 = vector.extract_strided_slice %19 {offsets = [5, 0], sizes = [1, 256], strides = [1, 1]} : vector<14x256xf32> to vector<1x256xf32>
      %26 = vector.extract_strided_slice %19 {offsets = [6, 0], sizes = [1, 256], strides = [1, 1]} : vector<14x256xf32> to vector<1x256xf32>
      %27 = vector.extract_strided_slice %19 {offsets = [7, 0], sizes = [1, 256], strides = [1, 1]} : vector<14x256xf32> to vector<1x256xf32>
      %28 = vector.extract_strided_slice %19 {offsets = [8, 0], sizes = [1, 256], strides = [1, 1]} : vector<14x256xf32> to vector<1x256xf32>
      %29 = vector.extract_strided_slice %19 {offsets = [9, 0], sizes = [1, 256], strides = [1, 1]} : vector<14x256xf32> to vector<1x256xf32>
      %30 = vector.extract_strided_slice %19 {offsets = [10, 0], sizes = [1, 256], strides = [1, 1]} : vector<14x256xf32> to vector<1x256xf32>
      %31 = vector.extract_strided_slice %19 {offsets = [11, 0], sizes = [1, 256], strides = [1, 1]} : vector<14x256xf32> to vector<1x256xf32>
      %32 = vector.extract_strided_slice %19 {offsets = [12, 0], sizes = [1, 256], strides = [1, 1]} : vector<14x256xf32> to vector<1x256xf32>
      %33 = vector.extract_strided_slice %19 {offsets = [13, 0], sizes = [1, 256], strides = [1, 1]} : vector<14x256xf32> to vector<1x256xf32>
      %c0_21 = arith.constant 0 : index
      %34 = memref.load %arg2[%c0_21] : memref<98xf32, #tpu.memory_space<smem>>
      %c1 = arith.constant 1 : index
      %35 = memref.load %arg2[%c1] : memref<98xf32, #tpu.memory_space<smem>>
      %c2 = arith.constant 2 : index
      %36 = memref.load %arg2[%c2] : memref<98xf32, #tpu.memory_space<smem>>
      %c3 = arith.constant 3 : index
      %37 = memref.load %arg2[%c3] : memref<98xf32, #tpu.memory_space<smem>>
      %c4 = arith.constant 4 : index
      %38 = memref.load %arg2[%c4] : memref<98xf32, #tpu.memory_space<smem>>
      %c5 = arith.constant 5 : index
      %39 = memref.load %arg2[%c5] : memref<98xf32, #tpu.memory_space<smem>>
      %c6 = arith.constant 6 : index
      %40 = memref.load %arg2[%c6] : memref<98xf32, #tpu.memory_space<smem>>
      %c7 = arith.constant 7 : index
      %41 = memref.load %arg2[%c7] : memref<98xf32, #tpu.memory_space<smem>>
      %c8 = arith.constant 8 : index
      %42 = memref.load %arg2[%c8] : memref<98xf32, #tpu.memory_space<smem>>
      %c9 = arith.constant 9 : index
      %43 = memref.load %arg2[%c9] : memref<98xf32, #tpu.memory_space<smem>>
      %c10 = arith.constant 10 : index
      %44 = memref.load %arg2[%c10] : memref<98xf32, #tpu.memory_space<smem>>
      %c11 = arith.constant 11 : index
      %45 = memref.load %arg2[%c11] : memref<98xf32, #tpu.memory_space<smem>>
      %c12 = arith.constant 12 : index
      %46 = memref.load %arg2[%c12] : memref<98xf32, #tpu.memory_space<smem>>
      %c13 = arith.constant 13 : index
      %47 = memref.load %arg2[%c13] : memref<98xf32, #tpu.memory_space<smem>>
      %c14 = arith.constant 14 : index
      %48 = memref.load %arg2[%c14] : memref<98xf32, #tpu.memory_space<smem>>
      %c15 = arith.constant 15 : index
      %49 = memref.load %arg2[%c15] : memref<98xf32, #tpu.memory_space<smem>>
      %c16 = arith.constant 16 : index
      %50 = memref.load %arg2[%c16] : memref<98xf32, #tpu.memory_space<smem>>
      %c17 = arith.constant 17 : index
      %51 = memref.load %arg2[%c17] : memref<98xf32, #tpu.memory_space<smem>>
      %c18 = arith.constant 18 : index
      %52 = memref.load %arg2[%c18] : memref<98xf32, #tpu.memory_space<smem>>
      %c19 = arith.constant 19 : index
      %53 = memref.load %arg2[%c19] : memref<98xf32, #tpu.memory_space<smem>>
      %c20 = arith.constant 20 : index
      %54 = memref.load %arg2[%c20] : memref<98xf32, #tpu.memory_space<smem>>
      %c21 = arith.constant 21 : index
      %55 = memref.load %arg2[%c21] : memref<98xf32, #tpu.memory_space<smem>>
      %c22 = arith.constant 22 : index
      %56 = memref.load %arg2[%c22] : memref<98xf32, #tpu.memory_space<smem>>
      %c23 = arith.constant 23 : index
      %57 = memref.load %arg2[%c23] : memref<98xf32, #tpu.memory_space<smem>>
      %c24 = arith.constant 24 : index
      %58 = memref.load %arg2[%c24] : memref<98xf32, #tpu.memory_space<smem>>
      %c25 = arith.constant 25 : index
      %59 = memref.load %arg2[%c25] : memref<98xf32, #tpu.memory_space<smem>>
      %c26 = arith.constant 26 : index
      %60 = memref.load %arg2[%c26] : memref<98xf32, #tpu.memory_space<smem>>
      %c27 = arith.constant 27 : index
      %61 = memref.load %arg2[%c27] : memref<98xf32, #tpu.memory_space<smem>>
      %c28 = arith.constant 28 : index
      %62 = memref.load %arg2[%c28] : memref<98xf32, #tpu.memory_space<smem>>
      %c29 = arith.constant 29 : index
      %63 = memref.load %arg2[%c29] : memref<98xf32, #tpu.memory_space<smem>>
      %c30 = arith.constant 30 : index
      %64 = memref.load %arg2[%c30] : memref<98xf32, #tpu.memory_space<smem>>
      %c31 = arith.constant 31 : index
      %65 = memref.load %arg2[%c31] : memref<98xf32, #tpu.memory_space<smem>>
      %c32 = arith.constant 32 : index
      %66 = memref.load %arg2[%c32] : memref<98xf32, #tpu.memory_space<smem>>
      %c33 = arith.constant 33 : index
      %67 = memref.load %arg2[%c33] : memref<98xf32, #tpu.memory_space<smem>>
      %c34 = arith.constant 34 : index
      %68 = memref.load %arg2[%c34] : memref<98xf32, #tpu.memory_space<smem>>
      %c35 = arith.constant 35 : index
      %69 = memref.load %arg2[%c35] : memref<98xf32, #tpu.memory_space<smem>>
      %c36 = arith.constant 36 : index
      %70 = memref.load %arg2[%c36] : memref<98xf32, #tpu.memory_space<smem>>
      %c37 = arith.constant 37 : index
      %71 = memref.load %arg2[%c37] : memref<98xf32, #tpu.memory_space<smem>>
      %c38 = arith.constant 38 : index
      %72 = memref.load %arg2[%c38] : memref<98xf32, #tpu.memory_space<smem>>
      %c39 = arith.constant 39 : index
      %73 = memref.load %arg2[%c39] : memref<98xf32, #tpu.memory_space<smem>>
      %c40 = arith.constant 40 : index
      %74 = memref.load %arg2[%c40] : memref<98xf32, #tpu.memory_space<smem>>
      %c41 = arith.constant 41 : index
      %75 = memref.load %arg2[%c41] : memref<98xf32, #tpu.memory_space<smem>>
      %c42 = arith.constant 42 : index
      %76 = memref.load %arg2[%c42] : memref<98xf32, #tpu.memory_space<smem>>
      %c43 = arith.constant 43 : index
      %77 = memref.load %arg2[%c43] : memref<98xf32, #tpu.memory_space<smem>>
      %c44 = arith.constant 44 : index
      %78 = memref.load %arg2[%c44] : memref<98xf32, #tpu.memory_space<smem>>
      %c45 = arith.constant 45 : index
      %79 = memref.load %arg2[%c45] : memref<98xf32, #tpu.memory_space<smem>>
      %c46 = arith.constant 46 : index
      %80 = memref.load %arg2[%c46] : memref<98xf32, #tpu.memory_space<smem>>
      %c47 = arith.constant 47 : index
      %81 = memref.load %arg2[%c47] : memref<98xf32, #tpu.memory_space<smem>>
      %c48 = arith.constant 48 : index
      %82 = memref.load %arg2[%c48] : memref<98xf32, #tpu.memory_space<smem>>
      %c49 = arith.constant 49 : index
      %83 = memref.load %arg2[%c49] : memref<98xf32, #tpu.memory_space<smem>>
      %c50 = arith.constant 50 : index
      %84 = memref.load %arg2[%c50] : memref<98xf32, #tpu.memory_space<smem>>
      %c51 = arith.constant 51 : index
      %85 = memref.load %arg2[%c51] : memref<98xf32, #tpu.memory_space<smem>>
      %c52 = arith.constant 52 : index
      %86 = memref.load %arg2[%c52] : memref<98xf32, #tpu.memory_space<smem>>
      %c53 = arith.constant 53 : index
      %87 = memref.load %arg2[%c53] : memref<98xf32, #tpu.memory_space<smem>>
      %c54 = arith.constant 54 : index
      %88 = memref.load %arg2[%c54] : memref<98xf32, #tpu.memory_space<smem>>
      %c55 = arith.constant 55 : index
      %89 = memref.load %arg2[%c55] : memref<98xf32, #tpu.memory_space<smem>>
      %c56 = arith.constant 56 : index
      %90 = memref.load %arg2[%c56] : memref<98xf32, #tpu.memory_space<smem>>
      %c57 = arith.constant 57 : index
      %91 = memref.load %arg2[%c57] : memref<98xf32, #tpu.memory_space<smem>>
      %c58 = arith.constant 58 : index
      %92 = memref.load %arg2[%c58] : memref<98xf32, #tpu.memory_space<smem>>
      %c59 = arith.constant 59 : index
      %93 = memref.load %arg2[%c59] : memref<98xf32, #tpu.memory_space<smem>>
      %c60 = arith.constant 60 : index
      %94 = memref.load %arg2[%c60] : memref<98xf32, #tpu.memory_space<smem>>
      %c61 = arith.constant 61 : index
      %95 = memref.load %arg2[%c61] : memref<98xf32, #tpu.memory_space<smem>>
      %c62 = arith.constant 62 : index
      %96 = memref.load %arg2[%c62] : memref<98xf32, #tpu.memory_space<smem>>
      %c63 = arith.constant 63 : index
      %97 = memref.load %arg2[%c63] : memref<98xf32, #tpu.memory_space<smem>>
      %c64 = arith.constant 64 : index
      %98 = memref.load %arg2[%c64] : memref<98xf32, #tpu.memory_space<smem>>
      %c65 = arith.constant 65 : index
      %99 = memref.load %arg2[%c65] : memref<98xf32, #tpu.memory_space<smem>>
      %c66 = arith.constant 66 : index
      %100 = memref.load %arg2[%c66] : memref<98xf32, #tpu.memory_space<smem>>
      %c67 = arith.constant 67 : index
      %101 = memref.load %arg2[%c67] : memref<98xf32, #tpu.memory_space<smem>>
      %c68 = arith.constant 68 : index
      %102 = memref.load %arg2[%c68] : memref<98xf32, #tpu.memory_space<smem>>
      %c69 = arith.constant 69 : index
      %103 = memref.load %arg2[%c69] : memref<98xf32, #tpu.memory_space<smem>>
      %c70 = arith.constant 70 : index
      %104 = memref.load %arg2[%c70] : memref<98xf32, #tpu.memory_space<smem>>
      %c71 = arith.constant 71 : index
      %105 = memref.load %arg2[%c71] : memref<98xf32, #tpu.memory_space<smem>>
      %c72 = arith.constant 72 : index
      %106 = memref.load %arg2[%c72] : memref<98xf32, #tpu.memory_space<smem>>
      %c73 = arith.constant 73 : index
      %107 = memref.load %arg2[%c73] : memref<98xf32, #tpu.memory_space<smem>>
      %c74 = arith.constant 74 : index
      %108 = memref.load %arg2[%c74] : memref<98xf32, #tpu.memory_space<smem>>
      %c75 = arith.constant 75 : index
      %109 = memref.load %arg2[%c75] : memref<98xf32, #tpu.memory_space<smem>>
      %c76 = arith.constant 76 : index
      %110 = memref.load %arg2[%c76] : memref<98xf32, #tpu.memory_space<smem>>
      %c77 = arith.constant 77 : index
      %111 = memref.load %arg2[%c77] : memref<98xf32, #tpu.memory_space<smem>>
      %c78 = arith.constant 78 : index
      %112 = memref.load %arg2[%c78] : memref<98xf32, #tpu.memory_space<smem>>
      %c79 = arith.constant 79 : index
      %113 = memref.load %arg2[%c79] : memref<98xf32, #tpu.memory_space<smem>>
      %c80 = arith.constant 80 : index
      %114 = memref.load %arg2[%c80] : memref<98xf32, #tpu.memory_space<smem>>
      %c81 = arith.constant 81 : index
      %115 = memref.load %arg2[%c81] : memref<98xf32, #tpu.memory_space<smem>>
      %c82 = arith.constant 82 : index
      %116 = memref.load %arg2[%c82] : memref<98xf32, #tpu.memory_space<smem>>
      %c83 = arith.constant 83 : index
      %117 = memref.load %arg2[%c83] : memref<98xf32, #tpu.memory_space<smem>>
      %c84 = arith.constant 84 : index
      %118 = memref.load %arg2[%c84] : memref<98xf32, #tpu.memory_space<smem>>
      %c85 = arith.constant 85 : index
      %119 = memref.load %arg2[%c85] : memref<98xf32, #tpu.memory_space<smem>>
      %c86 = arith.constant 86 : index
      %120 = memref.load %arg2[%c86] : memref<98xf32, #tpu.memory_space<smem>>
      %c87 = arith.constant 87 : index
      %121 = memref.load %arg2[%c87] : memref<98xf32, #tpu.memory_space<smem>>
      %c88 = arith.constant 88 : index
      %122 = memref.load %arg2[%c88] : memref<98xf32, #tpu.memory_space<smem>>
      %c89 = arith.constant 89 : index
      %123 = memref.load %arg2[%c89] : memref<98xf32, #tpu.memory_space<smem>>
      %c90 = arith.constant 90 : index
      %124 = memref.load %arg2[%c90] : memref<98xf32, #tpu.memory_space<smem>>
      %c91 = arith.constant 91 : index
      %125 = memref.load %arg2[%c91] : memref<98xf32, #tpu.memory_space<smem>>
      %c92 = arith.constant 92 : index
      %126 = memref.load %arg2[%c92] : memref<98xf32, #tpu.memory_space<smem>>
      %c93 = arith.constant 93 : index
      %127 = memref.load %arg2[%c93] : memref<98xf32, #tpu.memory_space<smem>>
      %c94 = arith.constant 94 : index
      %128 = memref.load %arg2[%c94] : memref<98xf32, #tpu.memory_space<smem>>
      %c95 = arith.constant 95 : index
      %129 = memref.load %arg2[%c95] : memref<98xf32, #tpu.memory_space<smem>>
      %c96 = arith.constant 96 : index
      %130 = memref.load %arg2[%c96] : memref<98xf32, #tpu.memory_space<smem>>
      %c97 = arith.constant 97 : index
      %131 = memref.load %arg2[%c97] : memref<98xf32, #tpu.memory_space<smem>>
      %c3_i32 = arith.constant 3 : i32
      %132 = tpu.dynamic_rotate %17 by %c3_i32 dim 1 : vector<1x256xf32>, i32 -> vector<1x256xf32>
      %133 = arith.mulf %132, %20 : vector<1x256xf32>
      %c2_i32 = arith.constant 2 : i32
      %134 = tpu.dynamic_rotate %17 by %c2_i32 dim 1 : vector<1x256xf32>, i32 -> vector<1x256xf32>
      %135 = arith.mulf %134, %21 : vector<1x256xf32>
      %c1_i32 = arith.constant 1 : i32
      %136 = tpu.dynamic_rotate %17 by %c1_i32 dim 1 : vector<1x256xf32>, i32 -> vector<1x256xf32>
      %137 = arith.mulf %136, %22 : vector<1x256xf32>
      %138 = arith.mulf %17, %23 : vector<1x256xf32>
      %c255_i32 = arith.constant 255 : i32
      %139 = tpu.dynamic_rotate %17 by %c255_i32 dim 1 : vector<1x256xf32>, i32 -> vector<1x256xf32>
      %140 = arith.mulf %139, %24 : vector<1x256xf32>
      %c254_i32 = arith.constant 254 : i32
      %141 = tpu.dynamic_rotate %17 by %c254_i32 dim 1 : vector<1x256xf32>, i32 -> vector<1x256xf32>
      %142 = arith.mulf %141, %25 : vector<1x256xf32>
      %c253_i32 = arith.constant 253 : i32
      %143 = tpu.dynamic_rotate %17 by %c253_i32 dim 1 : vector<1x256xf32>, i32 -> vector<1x256xf32>
      %144 = arith.mulf %143, %26 : vector<1x256xf32>
      %c3_i32_22 = arith.constant 3 : i32
      %145 = tpu.dynamic_rotate %18 by %c3_i32_22 dim 1 : vector<1x256xf32>, i32 -> vector<1x256xf32>
      %146 = arith.mulf %145, %20 : vector<1x256xf32>
      %c2_i32_23 = arith.constant 2 : i32
      %147 = tpu.dynamic_rotate %18 by %c2_i32_23 dim 1 : vector<1x256xf32>, i32 -> vector<1x256xf32>
      %148 = arith.mulf %147, %21 : vector<1x256xf32>
      %c1_i32_24 = arith.constant 1 : i32
      %149 = tpu.dynamic_rotate %18 by %c1_i32_24 dim 1 : vector<1x256xf32>, i32 -> vector<1x256xf32>
      %150 = arith.mulf %149, %22 : vector<1x256xf32>
      %151 = arith.mulf %18, %23 : vector<1x256xf32>
      %c255_i32_25 = arith.constant 255 : i32
      %152 = tpu.dynamic_rotate %18 by %c255_i32_25 dim 1 : vector<1x256xf32>, i32 -> vector<1x256xf32>
      %153 = arith.mulf %152, %24 : vector<1x256xf32>
      %c254_i32_26 = arith.constant 254 : i32
      %154 = tpu.dynamic_rotate %18 by %c254_i32_26 dim 1 : vector<1x256xf32>, i32 -> vector<1x256xf32>
      %155 = arith.mulf %154, %25 : vector<1x256xf32>
      %c253_i32_27 = arith.constant 253 : i32
      %156 = tpu.dynamic_rotate %18 by %c253_i32_27 dim 1 : vector<1x256xf32>, i32 -> vector<1x256xf32>
      %157 = arith.mulf %156, %26 : vector<1x256xf32>
      %cst_28 = arith.constant 0.000000e+00 : f32
      %158 = vector.broadcast %cst_28 : f32 to vector<1x256xf32>
      %cst_29 = arith.constant 0.000000e+00 : f32
      %159 = vector.broadcast %cst_29 : f32 to vector<1x256xf32>
      %160 = vector.broadcast %34 : f32 to vector<1x256xf32>
      %161 = arith.mulf %160, %133 : vector<1x256xf32>
      %162 = arith.addf %159, %161 : vector<1x256xf32>
      %163 = vector.broadcast %83 : f32 to vector<1x256xf32>
      %164 = arith.mulf %163, %146 : vector<1x256xf32>
      %165 = arith.addf %162, %164 : vector<1x256xf32>
      %166 = vector.broadcast %35 : f32 to vector<1x256xf32>
      %167 = arith.mulf %166, %135 : vector<1x256xf32>
      %168 = arith.addf %165, %167 : vector<1x256xf32>
      %169 = vector.broadcast %84 : f32 to vector<1x256xf32>
      %170 = arith.mulf %169, %148 : vector<1x256xf32>
      %171 = arith.addf %168, %170 : vector<1x256xf32>
      %172 = vector.broadcast %36 : f32 to vector<1x256xf32>
      %173 = arith.mulf %172, %137 : vector<1x256xf32>
      %174 = arith.addf %171, %173 : vector<1x256xf32>
      %175 = vector.broadcast %85 : f32 to vector<1x256xf32>
      %176 = arith.mulf %175, %150 : vector<1x256xf32>
      %177 = arith.addf %174, %176 : vector<1x256xf32>
      %178 = vector.broadcast %37 : f32 to vector<1x256xf32>
      %179 = arith.mulf %178, %138 : vector<1x256xf32>
      %180 = arith.addf %177, %179 : vector<1x256xf32>
      %181 = vector.broadcast %86 : f32 to vector<1x256xf32>
      %182 = arith.mulf %181, %151 : vector<1x256xf32>
      %183 = arith.addf %180, %182 : vector<1x256xf32>
      %184 = vector.broadcast %38 : f32 to vector<1x256xf32>
      %185 = arith.mulf %184, %140 : vector<1x256xf32>
      %186 = arith.addf %183, %185 : vector<1x256xf32>
      %187 = vector.broadcast %87 : f32 to vector<1x256xf32>
      %188 = arith.mulf %187, %153 : vector<1x256xf32>
      %189 = arith.addf %186, %188 : vector<1x256xf32>
      %190 = vector.broadcast %39 : f32 to vector<1x256xf32>
      %191 = arith.mulf %190, %142 : vector<1x256xf32>
      %192 = arith.addf %189, %191 : vector<1x256xf32>
      %193 = vector.broadcast %88 : f32 to vector<1x256xf32>
      %194 = arith.mulf %193, %155 : vector<1x256xf32>
      %195 = arith.addf %192, %194 : vector<1x256xf32>
      %196 = vector.broadcast %40 : f32 to vector<1x256xf32>
      %197 = arith.mulf %196, %144 : vector<1x256xf32>
      %198 = arith.addf %195, %197 : vector<1x256xf32>
      %199 = vector.broadcast %89 : f32 to vector<1x256xf32>
      %200 = arith.mulf %199, %157 : vector<1x256xf32>
      %201 = arith.addf %198, %200 : vector<1x256xf32>
      %c48_i32 = arith.constant 48 : i32
      %202 = tpu.dynamic_rotate %201 by %c48_i32 dim 1 : vector<1x256xf32>, i32 -> vector<1x256xf32>
      %203 = arith.mulf %27, %202 : vector<1x256xf32>
      %204 = arith.addf %158, %203 : vector<1x256xf32>
      %cst_30 = arith.constant 0.000000e+00 : f32
      %205 = vector.broadcast %cst_30 : f32 to vector<1x256xf32>
      %206 = vector.broadcast %41 : f32 to vector<1x256xf32>
      %207 = arith.mulf %206, %133 : vector<1x256xf32>
      %208 = arith.addf %205, %207 : vector<1x256xf32>
      %209 = vector.broadcast %90 : f32 to vector<1x256xf32>
      %210 = arith.mulf %209, %146 : vector<1x256xf32>
      %211 = arith.addf %208, %210 : vector<1x256xf32>
      %212 = vector.broadcast %42 : f32 to vector<1x256xf32>
      %213 = arith.mulf %212, %135 : vector<1x256xf32>
      %214 = arith.addf %211, %213 : vector<1x256xf32>
      %215 = vector.broadcast %91 : f32 to vector<1x256xf32>
      %216 = arith.mulf %215, %148 : vector<1x256xf32>
      %217 = arith.addf %214, %216 : vector<1x256xf32>
      %218 = vector.broadcast %43 : f32 to vector<1x256xf32>
      %219 = arith.mulf %218, %137 : vector<1x256xf32>
      %220 = arith.addf %217, %219 : vector<1x256xf32>
      %221 = vector.broadcast %92 : f32 to vector<1x256xf32>
      %222 = arith.mulf %221, %150 : vector<1x256xf32>
      %223 = arith.addf %220, %222 : vector<1x256xf32>
      %224 = vector.broadcast %44 : f32 to vector<1x256xf32>
      %225 = arith.mulf %224, %138 : vector<1x256xf32>
      %226 = arith.addf %223, %225 : vector<1x256xf32>
      %227 = vector.broadcast %93 : f32 to vector<1x256xf32>
      %228 = arith.mulf %227, %151 : vector<1x256xf32>
      %229 = arith.addf %226, %228 : vector<1x256xf32>
      %230 = vector.broadcast %45 : f32 to vector<1x256xf32>
      %231 = arith.mulf %230, %140 : vector<1x256xf32>
      %232 = arith.addf %229, %231 : vector<1x256xf32>
      %233 = vector.broadcast %94 : f32 to vector<1x256xf32>
      %234 = arith.mulf %233, %153 : vector<1x256xf32>
      %235 = arith.addf %232, %234 : vector<1x256xf32>
      %236 = vector.broadcast %46 : f32 to vector<1x256xf32>
      %237 = arith.mulf %236, %142 : vector<1x256xf32>
      %238 = arith.addf %235, %237 : vector<1x256xf32>
      %239 = vector.broadcast %95 : f32 to vector<1x256xf32>
      %240 = arith.mulf %239, %155 : vector<1x256xf32>
      %241 = arith.addf %238, %240 : vector<1x256xf32>
      %242 = vector.broadcast %47 : f32 to vector<1x256xf32>
      %243 = arith.mulf %242, %144 : vector<1x256xf32>
      %244 = arith.addf %241, %243 : vector<1x256xf32>
      %245 = vector.broadcast %96 : f32 to vector<1x256xf32>
      %246 = arith.mulf %245, %157 : vector<1x256xf32>
      %247 = arith.addf %244, %246 : vector<1x256xf32>
      %c32_i32 = arith.constant 32 : i32
      %248 = tpu.dynamic_rotate %247 by %c32_i32 dim 1 : vector<1x256xf32>, i32 -> vector<1x256xf32>
      %249 = arith.mulf %28, %248 : vector<1x256xf32>
      %250 = arith.addf %204, %249 : vector<1x256xf32>
      %cst_31 = arith.constant 0.000000e+00 : f32
      %251 = vector.broadcast %cst_31 : f32 to vector<1x256xf32>
      %252 = vector.broadcast %48 : f32 to vector<1x256xf32>
      %253 = arith.mulf %252, %133 : vector<1x256xf32>
      %254 = arith.addf %251, %253 : vector<1x256xf32>
      %255 = vector.broadcast %97 : f32 to vector<1x256xf32>
      %256 = arith.mulf %255, %146 : vector<1x256xf32>
      %257 = arith.addf %254, %256 : vector<1x256xf32>
      %258 = vector.broadcast %49 : f32 to vector<1x256xf32>
      %259 = arith.mulf %258, %135 : vector<1x256xf32>
      %260 = arith.addf %257, %259 : vector<1x256xf32>
      %261 = vector.broadcast %98 : f32 to vector<1x256xf32>
      %262 = arith.mulf %261, %148 : vector<1x256xf32>
      %263 = arith.addf %260, %262 : vector<1x256xf32>
      %264 = vector.broadcast %50 : f32 to vector<1x256xf32>
      %265 = arith.mulf %264, %137 : vector<1x256xf32>
      %266 = arith.addf %263, %265 : vector<1x256xf32>
      %267 = vector.broadcast %99 : f32 to vector<1x256xf32>
      %268 = arith.mulf %267, %150 : vector<1x256xf32>
      %269 = arith.addf %266, %268 : vector<1x256xf32>
      %270 = vector.broadcast %51 : f32 to vector<1x256xf32>
      %271 = arith.mulf %270, %138 : vector<1x256xf32>
      %272 = arith.addf %269, %271 : vector<1x256xf32>
      %273 = vector.broadcast %100 : f32 to vector<1x256xf32>
      %274 = arith.mulf %273, %151 : vector<1x256xf32>
      %275 = arith.addf %272, %274 : vector<1x256xf32>
      %276 = vector.broadcast %52 : f32 to vector<1x256xf32>
      %277 = arith.mulf %276, %140 : vector<1x256xf32>
      %278 = arith.addf %275, %277 : vector<1x256xf32>
      %279 = vector.broadcast %101 : f32 to vector<1x256xf32>
      %280 = arith.mulf %279, %153 : vector<1x256xf32>
      %281 = arith.addf %278, %280 : vector<1x256xf32>
      %282 = vector.broadcast %53 : f32 to vector<1x256xf32>
      %283 = arith.mulf %282, %142 : vector<1x256xf32>
      %284 = arith.addf %281, %283 : vector<1x256xf32>
      %285 = vector.broadcast %102 : f32 to vector<1x256xf32>
      %286 = arith.mulf %285, %155 : vector<1x256xf32>
      %287 = arith.addf %284, %286 : vector<1x256xf32>
      %288 = vector.broadcast %54 : f32 to vector<1x256xf32>
      %289 = arith.mulf %288, %144 : vector<1x256xf32>
      %290 = arith.addf %287, %289 : vector<1x256xf32>
      %291 = vector.broadcast %103 : f32 to vector<1x256xf32>
      %292 = arith.mulf %291, %157 : vector<1x256xf32>
      %293 = arith.addf %290, %292 : vector<1x256xf32>
      %c16_i32 = arith.constant 16 : i32
      %294 = tpu.dynamic_rotate %293 by %c16_i32 dim 1 : vector<1x256xf32>, i32 -> vector<1x256xf32>
      %295 = arith.mulf %29, %294 : vector<1x256xf32>
      %296 = arith.addf %250, %295 : vector<1x256xf32>
      %cst_32 = arith.constant 0.000000e+00 : f32
      %297 = vector.broadcast %cst_32 : f32 to vector<1x256xf32>
      %298 = vector.broadcast %55 : f32 to vector<1x256xf32>
      %299 = arith.mulf %298, %133 : vector<1x256xf32>
      %300 = arith.addf %297, %299 : vector<1x256xf32>
      %301 = vector.broadcast %104 : f32 to vector<1x256xf32>
      %302 = arith.mulf %301, %146 : vector<1x256xf32>
      %303 = arith.addf %300, %302 : vector<1x256xf32>
      %304 = vector.broadcast %56 : f32 to vector<1x256xf32>
      %305 = arith.mulf %304, %135 : vector<1x256xf32>
      %306 = arith.addf %303, %305 : vector<1x256xf32>
      %307 = vector.broadcast %105 : f32 to vector<1x256xf32>
      %308 = arith.mulf %307, %148 : vector<1x256xf32>
      %309 = arith.addf %306, %308 : vector<1x256xf32>
      %310 = vector.broadcast %57 : f32 to vector<1x256xf32>
      %311 = arith.mulf %310, %137 : vector<1x256xf32>
      %312 = arith.addf %309, %311 : vector<1x256xf32>
      %313 = vector.broadcast %106 : f32 to vector<1x256xf32>
      %314 = arith.mulf %313, %150 : vector<1x256xf32>
      %315 = arith.addf %312, %314 : vector<1x256xf32>
      %316 = vector.broadcast %58 : f32 to vector<1x256xf32>
      %317 = arith.mulf %316, %138 : vector<1x256xf32>
      %318 = arith.addf %315, %317 : vector<1x256xf32>
      %319 = vector.broadcast %107 : f32 to vector<1x256xf32>
      %320 = arith.mulf %319, %151 : vector<1x256xf32>
      %321 = arith.addf %318, %320 : vector<1x256xf32>
      %322 = vector.broadcast %59 : f32 to vector<1x256xf32>
      %323 = arith.mulf %322, %140 : vector<1x256xf32>
      %324 = arith.addf %321, %323 : vector<1x256xf32>
      %325 = vector.broadcast %108 : f32 to vector<1x256xf32>
      %326 = arith.mulf %325, %153 : vector<1x256xf32>
      %327 = arith.addf %324, %326 : vector<1x256xf32>
      %328 = vector.broadcast %60 : f32 to vector<1x256xf32>
      %329 = arith.mulf %328, %142 : vector<1x256xf32>
      %330 = arith.addf %327, %329 : vector<1x256xf32>
      %331 = vector.broadcast %109 : f32 to vector<1x256xf32>
      %332 = arith.mulf %331, %155 : vector<1x256xf32>
      %333 = arith.addf %330, %332 : vector<1x256xf32>
      %334 = vector.broadcast %61 : f32 to vector<1x256xf32>
      %335 = arith.mulf %334, %144 : vector<1x256xf32>
      %336 = arith.addf %333, %335 : vector<1x256xf32>
      %337 = vector.broadcast %110 : f32 to vector<1x256xf32>
      %338 = arith.mulf %337, %157 : vector<1x256xf32>
      %339 = arith.addf %336, %338 : vector<1x256xf32>
      %340 = arith.mulf %30, %339 : vector<1x256xf32>
      %341 = arith.addf %296, %340 : vector<1x256xf32>
      %cst_33 = arith.constant 0.000000e+00 : f32
      %342 = vector.broadcast %cst_33 : f32 to vector<1x256xf32>
      %343 = vector.broadcast %62 : f32 to vector<1x256xf32>
      %344 = arith.mulf %343, %133 : vector<1x256xf32>
      %345 = arith.addf %342, %344 : vector<1x256xf32>
      %346 = vector.broadcast %111 : f32 to vector<1x256xf32>
      %347 = arith.mulf %346, %146 : vector<1x256xf32>
      %348 = arith.addf %345, %347 : vector<1x256xf32>
      %349 = vector.broadcast %63 : f32 to vector<1x256xf32>
      %350 = arith.mulf %349, %135 : vector<1x256xf32>
      %351 = arith.addf %348, %350 : vector<1x256xf32>
      %352 = vector.broadcast %112 : f32 to vector<1x256xf32>
      %353 = arith.mulf %352, %148 : vector<1x256xf32>
      %354 = arith.addf %351, %353 : vector<1x256xf32>
      %355 = vector.broadcast %64 : f32 to vector<1x256xf32>
      %356 = arith.mulf %355, %137 : vector<1x256xf32>
      %357 = arith.addf %354, %356 : vector<1x256xf32>
      %358 = vector.broadcast %113 : f32 to vector<1x256xf32>
      %359 = arith.mulf %358, %150 : vector<1x256xf32>
      %360 = arith.addf %357, %359 : vector<1x256xf32>
      %361 = vector.broadcast %65 : f32 to vector<1x256xf32>
      %362 = arith.mulf %361, %138 : vector<1x256xf32>
      %363 = arith.addf %360, %362 : vector<1x256xf32>
      %364 = vector.broadcast %114 : f32 to vector<1x256xf32>
      %365 = arith.mulf %364, %151 : vector<1x256xf32>
      %366 = arith.addf %363, %365 : vector<1x256xf32>
      %367 = vector.broadcast %66 : f32 to vector<1x256xf32>
      %368 = arith.mulf %367, %140 : vector<1x256xf32>
      %369 = arith.addf %366, %368 : vector<1x256xf32>
      %370 = vector.broadcast %115 : f32 to vector<1x256xf32>
      %371 = arith.mulf %370, %153 : vector<1x256xf32>
      %372 = arith.addf %369, %371 : vector<1x256xf32>
      %373 = vector.broadcast %67 : f32 to vector<1x256xf32>
      %374 = arith.mulf %373, %142 : vector<1x256xf32>
      %375 = arith.addf %372, %374 : vector<1x256xf32>
      %376 = vector.broadcast %116 : f32 to vector<1x256xf32>
      %377 = arith.mulf %376, %155 : vector<1x256xf32>
      %378 = arith.addf %375, %377 : vector<1x256xf32>
      %379 = vector.broadcast %68 : f32 to vector<1x256xf32>
      %380 = arith.mulf %379, %144 : vector<1x256xf32>
      %381 = arith.addf %378, %380 : vector<1x256xf32>
      %382 = vector.broadcast %117 : f32 to vector<1x256xf32>
      %383 = arith.mulf %382, %157 : vector<1x256xf32>
      %384 = arith.addf %381, %383 : vector<1x256xf32>
      %c240_i32 = arith.constant 240 : i32
      %385 = tpu.dynamic_rotate %384 by %c240_i32 dim 1 : vector<1x256xf32>, i32 -> vector<1x256xf32>
      %386 = arith.mulf %31, %385 : vector<1x256xf32>
      %387 = arith.addf %341, %386 : vector<1x256xf32>
      %cst_34 = arith.constant 0.000000e+00 : f32
      %388 = vector.broadcast %cst_34 : f32 to vector<1x256xf32>
      %389 = vector.broadcast %69 : f32 to vector<1x256xf32>
      %390 = arith.mulf %389, %133 : vector<1x256xf32>
      %391 = arith.addf %388, %390 : vector<1x256xf32>
      %392 = vector.broadcast %118 : f32 to vector<1x256xf32>
      %393 = arith.mulf %392, %146 : vector<1x256xf32>
      %394 = arith.addf %391, %393 : vector<1x256xf32>
      %395 = vector.broadcast %70 : f32 to vector<1x256xf32>
      %396 = arith.mulf %395, %135 : vector<1x256xf32>
      %397 = arith.addf %394, %396 : vector<1x256xf32>
      %398 = vector.broadcast %119 : f32 to vector<1x256xf32>
      %399 = arith.mulf %398, %148 : vector<1x256xf32>
      %400 = arith.addf %397, %399 : vector<1x256xf32>
      %401 = vector.broadcast %71 : f32 to vector<1x256xf32>
      %402 = arith.mulf %401, %137 : vector<1x256xf32>
      %403 = arith.addf %400, %402 : vector<1x256xf32>
      %404 = vector.broadcast %120 : f32 to vector<1x256xf32>
      %405 = arith.mulf %404, %150 : vector<1x256xf32>
      %406 = arith.addf %403, %405 : vector<1x256xf32>
      %407 = vector.broadcast %72 : f32 to vector<1x256xf32>
      %408 = arith.mulf %407, %138 : vector<1x256xf32>
      %409 = arith.addf %406, %408 : vector<1x256xf32>
      %410 = vector.broadcast %121 : f32 to vector<1x256xf32>
      %411 = arith.mulf %410, %151 : vector<1x256xf32>
      %412 = arith.addf %409, %411 : vector<1x256xf32>
      %413 = vector.broadcast %73 : f32 to vector<1x256xf32>
      %414 = arith.mulf %413, %140 : vector<1x256xf32>
      %415 = arith.addf %412, %414 : vector<1x256xf32>
      %416 = vector.broadcast %122 : f32 to vector<1x256xf32>
      %417 = arith.mulf %416, %153 : vector<1x256xf32>
      %418 = arith.addf %415, %417 : vector<1x256xf32>
      %419 = vector.broadcast %74 : f32 to vector<1x256xf32>
      %420 = arith.mulf %419, %142 : vector<1x256xf32>
      %421 = arith.addf %418, %420 : vector<1x256xf32>
      %422 = vector.broadcast %123 : f32 to vector<1x256xf32>
      %423 = arith.mulf %422, %155 : vector<1x256xf32>
      %424 = arith.addf %421, %423 : vector<1x256xf32>
      %425 = vector.broadcast %75 : f32 to vector<1x256xf32>
      %426 = arith.mulf %425, %144 : vector<1x256xf32>
      %427 = arith.addf %424, %426 : vector<1x256xf32>
      %428 = vector.broadcast %124 : f32 to vector<1x256xf32>
      %429 = arith.mulf %428, %157 : vector<1x256xf32>
      %430 = arith.addf %427, %429 : vector<1x256xf32>
      %c224_i32 = arith.constant 224 : i32
      %431 = tpu.dynamic_rotate %430 by %c224_i32 dim 1 : vector<1x256xf32>, i32 -> vector<1x256xf32>
      %432 = arith.mulf %32, %431 : vector<1x256xf32>
      %433 = arith.addf %387, %432 : vector<1x256xf32>
      %cst_35 = arith.constant 0.000000e+00 : f32
      %434 = vector.broadcast %cst_35 : f32 to vector<1x256xf32>
      %435 = vector.broadcast %76 : f32 to vector<1x256xf32>
      %436 = arith.mulf %435, %133 : vector<1x256xf32>
      %437 = arith.addf %434, %436 : vector<1x256xf32>
      %438 = vector.broadcast %125 : f32 to vector<1x256xf32>
      %439 = arith.mulf %438, %146 : vector<1x256xf32>
      %440 = arith.addf %437, %439 : vector<1x256xf32>
      %441 = vector.broadcast %77 : f32 to vector<1x256xf32>
      %442 = arith.mulf %441, %135 : vector<1x256xf32>
      %443 = arith.addf %440, %442 : vector<1x256xf32>
      %444 = vector.broadcast %126 : f32 to vector<1x256xf32>
      %445 = arith.mulf %444, %148 : vector<1x256xf32>
      %446 = arith.addf %443, %445 : vector<1x256xf32>
      %447 = vector.broadcast %78 : f32 to vector<1x256xf32>
      %448 = arith.mulf %447, %137 : vector<1x256xf32>
      %449 = arith.addf %446, %448 : vector<1x256xf32>
      %450 = vector.broadcast %127 : f32 to vector<1x256xf32>
      %451 = arith.mulf %450, %150 : vector<1x256xf32>
      %452 = arith.addf %449, %451 : vector<1x256xf32>
      %453 = vector.broadcast %79 : f32 to vector<1x256xf32>
      %454 = arith.mulf %453, %138 : vector<1x256xf32>
      %455 = arith.addf %452, %454 : vector<1x256xf32>
      %456 = vector.broadcast %128 : f32 to vector<1x256xf32>
      %457 = arith.mulf %456, %151 : vector<1x256xf32>
      %458 = arith.addf %455, %457 : vector<1x256xf32>
      %459 = vector.broadcast %80 : f32 to vector<1x256xf32>
      %460 = arith.mulf %459, %140 : vector<1x256xf32>
      %461 = arith.addf %458, %460 : vector<1x256xf32>
      %462 = vector.broadcast %129 : f32 to vector<1x256xf32>
      %463 = arith.mulf %462, %153 : vector<1x256xf32>
      %464 = arith.addf %461, %463 : vector<1x256xf32>
      %465 = vector.broadcast %81 : f32 to vector<1x256xf32>
      %466 = arith.mulf %465, %142 : vector<1x256xf32>
      %467 = arith.addf %464, %466 : vector<1x256xf32>
      %468 = vector.broadcast %130 : f32 to vector<1x256xf32>
      %469 = arith.mulf %468, %155 : vector<1x256xf32>
      %470 = arith.addf %467, %469 : vector<1x256xf32>
      %471 = vector.broadcast %82 : f32 to vector<1x256xf32>
      %472 = arith.mulf %471, %144 : vector<1x256xf32>
      %473 = arith.addf %470, %472 : vector<1x256xf32>
      %474 = vector.broadcast %131 : f32 to vector<1x256xf32>
      %475 = arith.mulf %474, %157 : vector<1x256xf32>
      %476 = arith.addf %473, %475 : vector<1x256xf32>
      %c208_i32 = arith.constant 208 : i32
      %477 = tpu.dynamic_rotate %476 by %c208_i32 dim 1 : vector<1x256xf32>, i32 -> vector<1x256xf32>
      %478 = arith.mulf %33, %477 : vector<1x256xf32>
      %479 = arith.addf %433, %478 : vector<1x256xf32>
      %480 = arith.negf %479 : vector<1x256xf32>
      %481 = math.exp %480 : vector<1x256xf32>
      %cst_36 = arith.constant 1.000000e+00 : f32
      %482 = vector.broadcast %cst_36 : f32 to vector<1x256xf32>
      %483 = arith.addf %482, %481 : vector<1x256xf32>
      %484 = arith.divf %482, %483 : vector<1x256xf32>
      %c0_37 = arith.constant 0 : index
      %c0_38 = arith.constant 0 : index
      %c0_39 = arith.constant 0 : index
      %485 = vector.load %arg5[%c0_37, %c0_38, %c0_39] : memref<1x1x256xf32, #tpu.memory_space<vmem>>, vector<1x1x256xf32>
      %486 = vector.shape_cast %485 : vector<1x1x256xf32> to vector<1x256xf32>
      %487 = vector.shape_cast %484 : vector<1x256xf32> to vector<1x1x256xf32>
      tpu.vector_store %arg5[%c0_37, %c0_38, %c0_39], %487 {strides = array<i32>} : memref<1x1x256xf32, #tpu.memory_space<vmem>>, vector<1x1x256xf32>,
    } else {
    }
    return
  }
  func.func @transform_0(%arg0: i32, %arg1: i32) -> i32 {
    %c0_i32 = arith.constant 0 : i32
    %c0_i32_0 = arith.constant 0 : i32
    return %c0_i32 : i32
  }
  func.func @transform_1(%arg0: i32, %arg1: i32) -> (i32, i32) {
    %c0_i32 = arith.constant 0 : i32
    %c0_i32_0 = arith.constant 0 : i32
    %c0_i32_1 = arith.constant 0 : i32
    return %c0_i32, %c0_i32_0 : i32, i32
  }
  func.func @transform_2(%arg0: i32, %arg1: i32) -> (i32, i32, i32) {
    %c0_i32 = arith.constant 0 : i32
    %c0_i32_0 = arith.constant 0 : i32
    return %arg0, %arg1, %c0_i32 : i32, i32, i32
  }
  func.func @transform_3(%arg0: i32, %arg1: i32) -> (i32, i32, i32) {
    %c0_i32 = arith.constant 0 : i32
    %c0_i32_0 = arith.constant 0 : i32
    %c0_i32_1 = arith.constant 0 : i32
    return %arg0, %c0_i32, %c0_i32_0 : i32, i32, i32
  }
}

</mosaic_0001>

<llo_original>
// kernel: tpu_custom_call.1
$region0: #{tpu_custom_call.1}
  #allocation0 [shape = 'u32[]', space=smem, size = 0x4, offset = 0x4, fixed_abs, tag = 'smem constant byte address 0x4 - core index']
  #allocation1 [shape = 'u32[144,128]{1,0:T(1,128)}', space=vmem, size = 0x12000, scoped, tag = 'internal scratch']
  #allocation2 [shape = 'f32[1,256]{1,0:T(1,128)}', space=vmem, size = 0x400, scoped, tag = 'scratch operand']
  #allocation3 [shape = 'f32[1,256]{1,0:T(1,128)}', space=vmem, size = 0x400, scoped, tag = 'scratch operand']
  %s0 = inlined_call_operand.hbm [shape: f32[98], index: 0, kind: input, shape index: {}]
  %s1 = inlined_call_operand.hbm [shape: f32[14,256], index: 1, kind: input, shape index: {}]
  %s2 = inlined_call_operand.hbm [shape: f32[2,4,256], index: 2, kind: input, shape index: {}]
  %s3 = inlined_call_operand.hbm [shape: f32[2,1,256], index: 3, kind: output, shape index: {}]
  %s4 = sld [smem:[#allocation0]]
  $region65: #{tpu_custom_call.1} parent=0
    _
  %s6 = ssub.s32 1, %s4
  %s7 = scalar_select 0, %s6, %s4
  $region1: #{tpu_custom_call.1} parent=0
    #allocation4 [shape = 'u8[512]{0}', space=smem, size = 0x200, scoped, tag = 'input window, operand 0, single buffered']
    #allocation5 [shape = 's32[2]{0}', space=sflag, size = 0x8, scoped, tag = 'scoped memory for tpu_custom_call.1']
    #allocation6 [shape = 's32[2]{0}', space=sflag, size = 0x8, scoped, tag = 'scoped memory for tpu_custom_call.1']
    #allocation7 [shape = 's32[2]{0}', space=sflag, size = 0x8, scoped, tag = 'scoped memory for tpu_custom_call.1']
    #allocation8 [shape = 'u8[16384]{0}', space=vmem, size = 0x4000, scoped, tag = 'input window, operand 1, single buffered']
    #allocation9 [shape = 'u8[8192]{0}', space=vmem, size = 0x2000, scoped, tag = 'input window, operand 2']
    #allocation10 [shape = 's32[2]{0}', space=sflag, size = 0x8, scoped, tag = 'scoped memory for tpu_custom_call.1']
    #allocation11 [shape = 'u8[2048]{0}', space=vmem, size = 0x800, scoped, tag = 'output window, operand 0']
    %8 = vsyncpa [#allocation7], 0
    %9 = vsyncpa [#allocation5], 0
    %10 = vsyncpa [#allocation10], 0
    %s11 = scalar_lea.sflag [#allocation10], 1
    %12 = vsyncpa %s11, 0
    %13 = vsyncpa [#allocation6], 0
    %s14 = scalar_lea.sflag [#allocation6], 1
    %15 = vsyncpa %s14, 0
    loop: start=0, step=1, limit=4
    $region2: #{tpu_custom_call.1} parent=1 // loop_pre_header
      _
    $region3: #{tpu_custom_call.1} parent=1 // loop_header
      %s17 = sphi 0, %s21
      %p18 = scmp.ge.s32.totalorder %s17, 4
      %s24 = sphi 0, %s36
      %s25 = sphi 0, %s32
      %s26 = sphi 0, %s24
      %s27 = sphi 0, %s25
      %s28 = sphi 0, %s26
      %s29 = sphi 0, %s27
      %s37 = sphi 0, %s37
      %s39 = sphi 0, %s37
      %s40 = sphi 0, %s39
      %s54 = sphi 0, %s40
      %s58 = sphi 0, %s58
      %s60 = sphi 0, %s58
      %s61 = sphi 0, %s60
      %s75 = sphi 0, %s61
      %s83 = sphi 0, %s85
      %s86 = sphi 0, %s83
      %s87 = sphi 0, %s86
      %s103 = sphi 0, %s87
      %s109 = sphi 0, %s111
      %s112 = sphi 0, %s109
      %s113 = sphi 0, %s112
      %s129 = sphi 0, %s113
    $region4: #{tpu_custom_call.1} parent=1 // loop_header_branch
      %20 = sbr.rel (%p18) target = $region8
    $region5: #{tpu_custom_call.1} parent=1 // loop_body
      %s22 = ssub.s32 %s17, 1
      %s23 = ssub.s32 %s17, 2
      %s30 = sadd.s32 1, %s25
      %p31 = scmp.ge.s32.totalorder %s30, 1
      %s32 = scalar_select %p31, 0, %s30
      %s33 = sadd.s32 1, %s24
      %s34 = scalar_select %p31, %s33, %s24
      %p35 = scmp.ge.s32.totalorder %s34, 2
      %s36 = scalar_select %p35, 0, %s34
      %s38 = sadd.s32 %s37, 1
      %p41 = scmp.eq.s32.totalorder %s17, 1
      %p42 = scmp.ne.s32.totalorder %s37, %s39
      %p43 = scmp.eq.s32.totalorder %s17, 0
      %p44 = por %p42, %p43
      %p45 = scmp.ne.s32.totalorder %s37, %s39
      %p46 = scmp.eq.s32.totalorder %s22, 1
      %p47 = por %p45, %p46
      %p48 = scmp.ne.s32.totalorder %s39, %s40
      %p49 = scmp.eq.s32.totalorder %s22, 0
      %p50 = por %p48, %p49
      %p51 = scmp.ne.s32.totalorder %s39, %s40
      %p52 = scmp.eq.s32.totalorder %s23, 1
      %p53 = por %p51, %p52
      %p55 = scmp.ne.s32.totalorder %s40, %s54
      %p56 = scmp.eq.s32.totalorder %s23, 0
      %p57 = por %p55, %p56
      %s59 = sadd.s32 %s58, 1
      %p62 = scmp.eq.s32.totalorder %s17, 1
      %p63 = scmp.ne.s32.totalorder %s58, %s60
      %p64 = scmp.eq.s32.totalorder %s17, 0
      %p65 = por %p63, %p64
      %p66 = scmp.ne.s32.totalorder %s58, %s60
      %p67 = scmp.eq.s32.totalorder %s22, 1
      %p68 = por %p66, %p67
      %p69 = scmp.ne.s32.totalorder %s60, %s61
      %p70 = scmp.eq.s32.totalorder %s22, 0
      %p71 = por %p69, %p70
      %p72 = scmp.ne.s32.totalorder %s60, %s61
      %p73 = scmp.eq.s32.totalorder %s23, 1
      %p74 = por %p72, %p73
      %p76 = scmp.ne.s32.totalorder %s61, %s75
      %p77 = scmp.eq.s32.totalorder %s23, 0
      %p78 = por %p76, %p77
      %s79 = ssub.s32 %s24, %s36
      %s80 = ssub.s32 %s25, %s32
      %s81 = sor.u32 %s79, %s80
      %p82 = scmp.eq.s32.totalorder %s81, 0
      %s84 = sadd.s32 %s83, 1
      %s85 = scalar_select %p82, %s83, %s84
      %p88 = pneg %p82
      %p89 = scmp.eq.s32.totalorder %s17, 1
      %p90 = por %p88, %p89
      %p91 = scmp.ne.s32.totalorder %s83, %s86
      %p92 = scmp.eq.s32.totalorder %s17, 0
      %p93 = por %p91, %p92
      %p94 = scmp.ne.s32.totalorder %s83, %s86
      %p95 = scmp.eq.s32.totalorder %s22, 1
      %p96 = por %p94, %p95
      %p97 = scmp.ne.s32.totalorder %s86, %s87
      %p98 = scmp.eq.s32.totalorder %s22, 0
      %p99 = por %p97, %p98
      %p100 = scmp.ne.s32.totalorder %s86, %s87
      %p101 = scmp.eq.s32.totalorder %s23, 1
      %p102 = por %p100, %p101
      %p104 = scmp.ne.s32.totalorder %s87, %s103
      %p105 = scmp.eq.s32.totalorder %s23, 0
      %p106 = por %p104, %p105
      %s107 = ssub.s32 %s24, %s36
      %p108 = scmp.eq.s32.totalorder %s107, 0
      %s110 = sadd.s32 %s109, 1
      %s111 = scalar_select %p108, %s109, %s110
      %p114 = pneg %p108
      %p115 = scmp.eq.s32.totalorder %s17, 1
      %p116 = por %p114, %p115
      %p117 = scmp.ne.s32.totalorder %s109, %s112
      %p118 = scmp.eq.s32.totalorder %s17, 0
      %p119 = por %p117, %p118
      %p120 = scmp.ne.s32.totalorder %s109, %s112
      %p121 = scmp.eq.s32.totalorder %s22, 1
      %p122 = por %p120, %p121
      %p123 = scmp.ne.s32.totalorder %s112, %s113
      %p124 = scmp.eq.s32.totalorder %s22, 0
      %p125 = por %p123, %p124
      %p126 = scmp.ne.s32.totalorder %s112, %s113
      %p127 = scmp.eq.s32.totalorder %s23, 1
      %p128 = por %p126, %p127
      %p130 = scmp.ne.s32.totalorder %s113, %s129
      %p131 = scmp.eq.s32.totalorder %s23, 0
      %p132 = por %p130, %p131
      %p133 = scmp.le.s32.totalorder 1, %s17
      %p134 = scmp.lt.s32.totalorder %s17, 3
      %p135 = pnand %p133, %p134
      %p136 = pneg %p135
      // Predicated region
      $region9: #{tpu_custom_call.1} parent=5 // pred_check
        _
      $region10: #{tpu_custom_call.1} parent=5 // pred_check_branch
        %138 = sbr.rel (%p135) target = $region12
      $region11: #{tpu_custom_call.1} parent=5 // pred_region
        %s139 = ssub.s32 %s17, 1
        // Predicated region
        $region13: #{tpu_custom_call.1} parent=11 // pred_check
          %p140 = pneg %p50
        $region14: #{tpu_custom_call.1} parent=11 // pred_check_branch
          %142 = sbr.rel (%p140) target = $region16
        $region15: #{tpu_custom_call.1} parent=11 // pred_region
          %s144 = ssub.s32 16, 16
          %145 = vsyncadd [#allocation7], %s144
          %148 = dma.hbm_to_smem %s0, 16, [#allocation4], [#allocation7]
        $region16: #{tpu_custom_call.1} parent=11 // pred_fallthru
          _
        // Predicated region
        $region17: #{tpu_custom_call.1} parent=11 // pred_check
          %p149 = pneg %p71
        $region18: #{tpu_custom_call.1} parent=11 // pred_check_branch
          %151 = sbr.rel (%p149) target = $region20
        $region19: #{tpu_custom_call.1} parent=11 // pred_region
          %s153 = ssub.s32 512, 512
          %154 = vsyncadd [#allocation5], %s153
          %s155 = sshll.u32 [#allocation8], 4
          %s156 = int_to_ptr.vmem [resolvable:$true] %s155
          %161 = dma.hbm_to_vmem [thread:$0]  %s1, 512, %s156, [#allocation5], 256, 256, 16
        $region20: #{tpu_custom_call.1} parent=11 // pred_fallthru
          _
      $region12: #{tpu_custom_call.1} parent=5 // pred_fallthru
        _
      %p162 = scmp.lt.s32.totalorder %s17, 2
      // Predicated region
      $region21: #{tpu_custom_call.1} parent=5 // pred_check
        %p163 = pneg %p162
      $region22: #{tpu_custom_call.1} parent=5 // pred_check_branch
        %165 = sbr.rel (%p163) target = $region24
      $region23: #{tpu_custom_call.1} parent=5 // pred_region
        // Predicated region
        $region25: #{tpu_custom_call.1} parent=23 // pred_check
          %p166 = pneg %p93
        $region26: #{tpu_custom_call.1} parent=23 // pred_check_branch
          %168 = sbr.rel (%p166) target = $region28
        $region27: #{tpu_custom_call.1} parent=23 // pred_region
          %s169 = sand.u32 %s83, 1
          %s170 = scalar_lea.sflag [#allocation10], %s169
          %s171 = sand.u32 %s83, 1
          %s172 = smul.addr %s171, 8
          %s173 = scalar_lea.vmem [#allocation9], %s172
          %s175 = ssub.s32 128, 128
          %176 = vsyncadd %s170, %s175
          %s177 = smul.addr %s25, 2
          %s178 = smul.addr %s24, 2
          %s179 = sadd.s32 %s177, %s178
          %s180 = smul.addr %s179, 64
          %s181 = scalar_lea.hbm %s2, %s180
          %s183 = sshll.u32 %s173, 4
          %s184 = int_to_ptr.vmem [resolvable:$true] %s183
          %186 = dma.hbm_to_vmem [thread:$0]  %s181, 128, %s184, %s170
        $region28: #{tpu_custom_call.1} parent=23 // pred_fallthru
          _
      $region24: #{tpu_custom_call.1} parent=5 // pred_fallthru
        _
      %p187 = scmp.le.s32.totalorder 1, %s17
      %p188 = scmp.lt.s32.totalorder %s17, 3
      %p189 = pnand %p187, %p188
      %p190 = pneg %p189
      // Predicated region
      $region29: #{tpu_custom_call.1} parent=5 // pred_check
        _
      $region30: #{tpu_custom_call.1} parent=5 // pred_check_branch
        %192 = sbr.rel (%p189) target = $region32
      $region31: #{tpu_custom_call.1} parent=5 // pred_region
        %s193 = ssub.s32 %s17, 1
        // Predicated region
        $region33: #{tpu_custom_call.1} parent=31 // pred_check
          %p194 = pneg %p50
        $region34: #{tpu_custom_call.1} parent=31 // pred_check_branch
          %196 = sbr.rel (%p194) target = $region36
        $region35: #{tpu_custom_call.1} parent=31 // pred_region
          %197 = dma.done [#allocation7], 16
        $region36: #{tpu_custom_call.1} parent=31 // pred_fallthru
          _
        // Predicated region
        $region37: #{tpu_custom_call.1} parent=31 // pred_check
          %p198 = pneg %p71
        $region38: #{tpu_custom_call.1} parent=31 // pred_check_branch
          %200 = sbr.rel (%p198) target = $region40
        $region39: #{tpu_custom_call.1} parent=31 // pred_region
          %201 = dma.done [#allocation5], 512
        $region40: #{tpu_custom_call.1} parent=31 // pred_fallthru
          _
        %s202 = sand.u32 %s86, 1
        %s203 = scalar_lea.sflag [#allocation10], %s202
        %s204 = sand.u32 %s86, 1
        %s205 = smul.addr %s204, 8
        %s206 = scalar_lea.vmem [#allocation9], %s205
        // Predicated region
        $region41: #{tpu_custom_call.1} parent=31 // pred_check
          %p207 = pneg %p99
        $region42: #{tpu_custom_call.1} parent=31 // pred_check_branch
          %209 = sbr.rel (%p207) target = $region44
        $region43: #{tpu_custom_call.1} parent=31 // pred_region
          %210 = dma.done %s203, 128
        $region44: #{tpu_custom_call.1} parent=31 // pred_fallthru
          _
        %211 = sfence
        %p212 = pneg %p50
        %p213 = pneg %p47
        %p214 = pneg %p71
        %p215 = pneg %p68
        %s216 = sand.u32 %s86, 1
        %s217 = scalar_lea.sflag [#allocation10], %s216
        %s218 = sand.u32 %s86, 1
        %s219 = smul.addr %s218, 8
        %s220 = scalar_lea.vmem [#allocation9], %s219
        %p221 = pneg %p99
        %p222 = pneg %p96
        %p223 = pneg %p125
        %p224 = pneg %p122
        %s225 = sand.u32 %s112, 1
        %s226 = scalar_lea.sflag [#allocation6], %s225
        %s227 = sand.u32 %s112, 1
        %s228 = smul.addr %s227, 2
        %s229 = scalar_lea.vmem [#allocation11], %s228
        %p230 = scmp.eq.s32.totalorder %s27, 0
        // Predicated region
        $region45: #{tpu_custom_call.1} parent=31 // pred_check
          %p231 = pneg %p230
        $region46: #{tpu_custom_call.1} parent=31 // pred_check_branch
          %233 = sbr.rel (%p231) target = $region48
        $region47: #{tpu_custom_call.1} parent=31 // pred_region
          %v234 = vlaneseq
          %vm235 = vcmp.ge.s32.totalorder %v234, 0
          %vm236 = vcmp.lt.s32.totalorder %v234, 256
          %vm237 = vmand %vm235, %vm236
          %238 = vst.msk [vmem:[#allocation2] sm:$0x3] %vm237, 0.0
          %239 = vst.msk [vmem:[#allocation3] sm:$0x3] %vm237, -inf
        $region48: #{tpu_custom_call.1} parent=31 // pred_fallthru
          _
        %v240 = vld [vmem:[%s206] sm:$0xff]
        %v241 = vld [vmem:[#allocation2] sm:$0x3]
        %v243 = vcombine.high %v240, %v240
        %vm245 = vcmask 1043456
        %v246 = vsel %vm245, %v240, 0.0
        %v247 = vrot.slane %v246, 4
        %v248 = vadd.f32 %v246, %v247
        %v249 = vrot.slane %v248, 2
        %v250 = vadd.f32 %v248, %v249
        %v251 = vrot.slane %v250, 1
        %v252 = vadd.f32 %v250, %v251
        %v253 = vsel %vm245, %v243, 0.0
        %v254 = vrot.slane %v253, 4
        %v255 = vadd.f32 %v253, %v254
        %v256 = vrot.slane %v255, 2
        %v257 = vadd.f32 %v255, %v256
        %v258 = vrot.slane %v257, 1
        %v259 = vadd.f32 %v257, %v258
        %v262 = vcombine.low %v252, %v259
        %v264 = vunpack.c.l.s4 1966171168
        %v265 = vunpack.c.0.s8 %v264
        %v266 = vlaneseq
        %v267 = vshrl.u32 %v266, 7
        %v268 = vsub.s32 %v265, %v267
        %v269 = vrot.slane %v262, %v268
        %v271 = vunpack.c.l.s4 1966171168
        %v272 = vunpack.c.0.s8 %v271
        %v273 = vlaneseq
        %v274 = vshrl.u32 %v273, 7
        %v275 = vsub.s32 %v272, %v274
        %v276 = vrot.slane %v269, %v275
        %v278 = vadd.f32 %v241, %v276
        %v279 = vlaneseq
        %vm280 = vcmp.ge.s32.totalorder %v279, 0
        %vm281 = vcmp.lt.s32.totalorder %v279, 256
        %vm282 = vmand %vm280, %vm281
        %283 = vst.msk [vmem:[#allocation2] sm:$0x3] %vm282, %v278
        %v284 = vld [vmem:[#allocation3] sm:$0x3]
        %v285 = vsel %vm245, %v240, -inf
        %v286 = vrot.slane %v285, 4
        %v287 = vmax.f32 %v285, %v286
        %v288 = vrot.slane %v287, 2
        %v289 = vmax.f32 %v287, %v288
        %v290 = vrot.slane %v289, 1
        %v291 = vmax.f32 %v289, %v290
        %v292 = vsel %vm245, %v243, -inf
        %v293 = vrot.slane %v292, 4
        %v294 = vmax.f32 %v292, %v293
        %v295 = vrot.slane %v294, 2
        %v296 = vmax.f32 %v294, %v295
        %v297 = vrot.slane %v296, 1
        %v298 = vmax.f32 %v296, %v297
        %v301 = vcombine.low %v291, %v298
        %v303 = vunpack.c.l.s4 1966171168
        %v304 = vunpack.c.0.s8 %v303
        %v305 = vlaneseq
        %v306 = vshrl.u32 %v305, 7
        %v307 = vsub.s32 %v304, %v306
        %v308 = vrot.slane %v301, %v307
        %v310 = vunpack.c.l.s4 1966171168
        %v311 = vunpack.c.0.s8 %v310
        %v312 = vlaneseq
        %v313 = vshrl.u32 %v312, 7
        %v314 = vsub.s32 %v311, %v313
        %v315 = vrot.slane %v308, %v314
        %v317 = vmax.f32 %v284, %v315
        %318 = vst.msk [vmem:[#allocation3] sm:$0x3] %vm282, %v317
        // Predicated region
        $region49: #{tpu_custom_call.1} parent=31 // pred_check
          %p319 = pneg %p230
        $region50: #{tpu_custom_call.1} parent=31 // pred_check_branch
          %321 = sbr.rel (%p319) target = $region52
        $region51: #{tpu_custom_call.1} parent=31 // pred_region
          %v322 = vld [vmem:[#allocation2] sm:$0x3]
          %v323 = vmul.f32 %v322, 0.25
          %v324 = vld [vmem:[#allocation3] sm:$0x3]
          %v325 = vld [vmem:[#allocation8] sm:$0xff]
          %v326 = vld [vmem:[#allocation8 + $0x8] sm:$0xff]
          %v327 = vld [vmem:[#allocation8 + $0x10] sm:$0x3f]
          %v328 = vld [vmem:[#allocation8 + $0x18] sm:$0x3f]
          %s329 = sld [smem:[#allocation4]]
          %s330 = sld [smem:[#allocation4 + $0x1]]
          %s331 = sld [smem:[#allocation4 + $0x2]]
          %s332 = sld [smem:[#allocation4 + $0x3]]
          %s333 = sld [smem:[#allocation4 + $0x4]]
          %s334 = sld [smem:[#allocation4 + $0x5]]
          %s335 = sld [smem:[#allocation4 + $0x6]]
          %s336 = sld [smem:[#allocation4 + $0x7]]
          %s337 = sld [smem:[#allocation4 + $0x8]]
          %s338 = sld [smem:[#allocation4 + $0x9]]
          %s339 = sld [smem:[#allocation4 + $0xa]]
          %s340 = sld [smem:[#allocation4 + $0xb]]
          %s341 = sld [smem:[#allocation4 + $0xc]]
          %s342 = sld [smem:[#allocation4 + $0xd]]
          %s343 = sld [smem:[#allocation4 + $0xe]]
          %s344 = sld [smem:[#allocation4 + $0xf]]
          %s345 = sld [smem:[#allocation4 + $0x10]]
          %s346 = sld [smem:[#allocation4 + $0x11]]
          %s347 = sld [smem:[#allocation4 + $0x12]]
          %s348 = sld [smem:[#allocation4 + $0x13]]
          %s349 = sld [smem:[#allocation4 + $0x14]]
          %s350 = sld [smem:[#allocation4 + $0x15]]
          %s351 = sld [smem:[#allocation4 + $0x16]]
          %s352 = sld [smem:[#allocation4 + $0x17]]
          %s353 = sld [smem:[#allocation4 + $0x18]]
          %s354 = sld [smem:[#allocation4 + $0x19]]
          %s355 = sld [smem:[#allocation4 + $0x1a]]
          %s356 = sld [smem:[#allocation4 + $0x1b]]
          %s357 = sld [smem:[#allocation4 + $0x1c]]
          %s358 = sld [smem:[#allocation4 + $0x1d]]
          %s359 = sld [smem:[#allocation4 + $0x1e]]
          %s360 = sld [smem:[#allocation4 + $0x1f]]
          %s361 = sld [smem:[#allocation4 + $0x20]]
          %s362 = sld [smem:[#allocation4 + $0x21]]
          %s363 = sld [smem:[#allocation4 + $0x22]]
          %s364 = sld [smem:[#allocation4 + $0x23]]
          %s365 = sld [smem:[#allocation4 + $0x24]]
          %s366 = sld [smem:[#allocation4 + $0x25]]
          %s367 = sld [smem:[#allocation4 + $0x26]]
          %s368 = sld [smem:[#allocation4 + $0x27]]
          %s369 = sld [smem:[#allocation4 + $0x28]]
          %s370 = sld [smem:[#allocation4 + $0x29]]
          %s371 = sld [smem:[#allocation4 + $0x2a]]
          %s372 = sld [smem:[#allocation4 + $0x2b]]
          %s373 = sld [smem:[#allocation4 + $0x2c]]
          %s374 = sld [smem:[#allocation4 + $0x2d]]
          %s375 = sld [smem:[#allocation4 + $0x2e]]
          %s376 = sld [smem:[#allocation4 + $0x2f]]
          %s377 = sld [smem:[#allocation4 + $0x30]]
          %s378 = sld [smem:[#allocation4 + $0x31]]
          %s379 = sld [smem:[#allocation4 + $0x32]]
          %s380 = sld [smem:[#allocation4 + $0x33]]
          %s381 = sld [smem:[#allocation4 + $0x34]]
          %s382 = sld [smem:[#allocation4 + $0x35]]
          %s383 = sld [smem:[#allocation4 + $0x36]]
          %s384 = sld [smem:[#allocation4 + $0x37]]
          %s385 = sld [smem:[#allocation4 + $0x38]]
          %s386 = sld [smem:[#allocation4 + $0x39]]
          %s387 = sld [smem:[#allocation4 + $0x3a]]
          %s388 = sld [smem:[#allocation4 + $0x3b]]
          %s389 = sld [smem:[#allocation4 + $0x3c]]
          %s390 = sld [smem:[#allocation4 + $0x3d]]
          %s391 = sld [smem:[#allocation4 + $0x3e]]
          %s392 = sld [smem:[#allocation4 + $0x3f]]
          %s393 = sld [smem:[#allocation4 + $0x40]]
          %s394 = sld [smem:[#allocation4 + $0x41]]
          %s395 = sld [smem:[#allocation4 + $0x42]]
          %s396 = sld [smem:[#allocation4 + $0x43]]
          %s397 = sld [smem:[#allocation4 + $0x44]]
          %s398 = sld [smem:[#allocation4 + $0x45]]
          %s399 = sld [smem:[#allocation4 + $0x46]]
          %s400 = sld [smem:[#allocation4 + $0x47]]
          %s401 = sld [smem:[#allocation4 + $0x48]]
          %s402 = sld [smem:[#allocation4 + $0x49]]
          %s403 = sld [smem:[#allocation4 + $0x4a]]
          %s404 = sld [smem:[#allocation4 + $0x4b]]
          %s405 = sld [smem:[#allocation4 + $0x4c]]
          %s406 = sld [smem:[#allocation4 + $0x4d]]
          %s407 = sld [smem:[#allocation4 + $0x4e]]
          %s408 = sld [smem:[#allocation4 + $0x4f]]
          %s409 = sld [smem:[#allocation4 + $0x50]]
          %s410 = sld [smem:[#allocation4 + $0x51]]
          %s411 = sld [smem:[#allocation4 + $0x52]]
          %s412 = sld [smem:[#allocation4 + $0x53]]
          %s413 = sld [smem:[#allocation4 + $0x54]]
          %s414 = sld [smem:[#allocation4 + $0x55]]
          %s415 = sld [smem:[#allocation4 + $0x56]]
          %s416 = sld [smem:[#allocation4 + $0x57]]
          %s417 = sld [smem:[#allocation4 + $0x58]]
          %s418 = sld [smem:[#allocation4 + $0x59]]
          %s419 = sld [smem:[#allocation4 + $0x5a]]
          %s420 = sld [smem:[#allocation4 + $0x5b]]
          %s421 = sld [smem:[#allocation4 + $0x5c]]
          %s422 = sld [smem:[#allocation4 + $0x5d]]
          %s423 = sld [smem:[#allocation4 + $0x5e]]
          %s424 = sld [smem:[#allocation4 + $0x5f]]
          %s425 = sld [smem:[#allocation4 + $0x60]]
          %s426 = sld [smem:[#allocation4 + $0x61]]
          %v428 = vlaneseq
          %v429 = vshrl.u32 %v428, 7
          %v430 = vsub.s32 0, %v429
          %v431 = vrot.slane %v323, %v430
          %v432 = vlaneseq
          %v433 = vshrl.u32 %v432, 7
          %v434 = vsub.s32 1, %v433
          %v435 = vrot.slane %v323, %v434
          %438 = vrot.lane.b32.xlu0 %v431, 3
          %v439 = vpop.permute.xlu0 %438
          %440 = vrot.lane.b32.xlu0 %v435, 3
          %v441 = vpop.permute.xlu0 %440
          %v442 = vlaneseq
          %v443 = vand.u32 %v442, 127
          %vm444 = vcmp.lt.s32.totalorder %v443, 3
          %v445 = vsel %vm444, %v439, %v441
          %v446 = vsel %vm444, %v441, %v439
          %v447 = vmul.f32 %v446, %v325
          %v448 = vmul.f32 %v445, %v326
          %449 = vrot.lane.b32.xlu0 %v431, 2
          %v450 = vpop.permute.xlu0 %449
          %451 = vrot.lane.b32.xlu0 %v435, 2
          %v452 = vpop.permute.xlu0 %451
          %vm453 = vcmp.lt.s32.totalorder %v443, 2
          %v454 = vsel %vm453, %v450, %v452
          %v455 = vsel %vm453, %v452, %v450
          %v458 = vrot.slane %v325, 1
          %v459 = vrot.slane %v326, 1
          %v462 = vmul.f32 %v455, %v458
          %v463 = vmul.f32 %v454, %v459
          %464 = vrot.lane.b32.xlu0 %v431, 1
          %v465 = vpop.permute.xlu0 %464
          %466 = vrot.lane.b32.xlu0 %v435, 1
          %v467 = vpop.permute.xlu0 %466
          %vm468 = vcmp.lt.s32.totalorder %v443, 1
          %v469 = vsel %vm468, %v465, %v467
          %v470 = vsel %vm468, %v467, %v465
          %v471 = vrot.slane %v325, 2
          %v472 = vrot.slane %v326, 2
          %v475 = vmul.f32 %v470, %v471
          %v476 = vmul.f32 %v469, %v472
          %v477 = vcombine.low %v325, %v326
          %v479 = vunpack.c.l.s4 1966171168
          %v480 = vunpack.c.0.s8 %v479
          %v481 = vlaneseq
          %v482 = vshrl.u32 %v481, 7
          %v483 = vsub.s32 %v480, %v482
          %v484 = vrot.slane %v477, %v483
          %v485 = vcombine.high %v484, %v484
          %v487 = vunpack.c.l.s4 1966171168
          %v488 = vunpack.c.0.s8 %v487
          %v489 = vlaneseq
          %v490 = vshrl.u32 %v489, 7
          %v491 = vsub.s32 %v488, %v490
          %v492 = vrot.slane %v485, %v491
          %v493 = vcombine.high %v492, %v492
          %v495 = vmul.f32 %v323, %v493
          %496 = vrot.lane.b32.xlu0 %v431, 127
          %v497 = vpop.permute.xlu0 %496
          %498 = vrot.lane.b32.xlu0 %v435, 127
          %v499 = vpop.permute.xlu0 %498
          %vm500 = vcmp.lt.s32.totalorder %v443, 127
          %v501 = vsel %vm500, %v497, %v499
          %v502 = vsel %vm500, %v499, %v497
          %v503 = vrot.slane %v325, 4
          %v504 = vrot.slane %v326, 4
          %v507 = vmul.f32 %v501, %v503
          %v508 = vmul.f32 %v502, %v504
          %509 = vrot.lane.b32.xlu0 %v431, 126
          %v510 = vpop.permute.xlu0 %509
          %511 = vrot.lane.b32.xlu0 %v435, 126
          %v512 = vpop.permute.xlu0 %511
          %vm513 = vcmp.lt.s32.totalorder %v443, 126
          %v514 = vsel %vm513, %v510, %v512
          %v515 = vsel %vm513, %v512, %v510
          %v516 = vrot.slane %v325, 5
          %v517 = vrot.slane %v326, 5
          %v520 = vmul.f32 %v514, %v516
          %v521 = vmul.f32 %v515, %v517
          %522 = vrot.lane.b32.xlu0 %v431, 125
          %v523 = vpop.permute.xlu0 %522
          %524 = vrot.lane.b32.xlu0 %v435, 125
          %v525 = vpop.permute.xlu0 %524
          %vm526 = vcmp.lt.s32.totalorder %v443, 125
          %v527 = vsel %vm526, %v523, %v525
          %v528 = vsel %vm526, %v525, %v523
          %v529 = vrot.slane %v325, 6
          %v530 = vrot.slane %v326, 6
          %v533 = vmul.f32 %v527, %v529
          %v534 = vmul.f32 %v528, %v530
          %v536 = vlaneseq
          %v537 = vshrl.u32 %v536, 7
          %v538 = vsub.s32 0, %v537
          %v539 = vrot.slane %v324, %v538
          %v540 = vlaneseq
          %v541 = vshrl.u32 %v540, 7
          %v542 = vsub.s32 1, %v541
          %v543 = vrot.slane %v324, %v542
          %546 = vrot.lane.b32.xlu0 %v539, 3
          %v547 = vpop.permute.xlu0 %546
          %548 = vrot.lane.b32.xlu0 %v543, 3
          %v549 = vpop.permute.xlu0 %548
          %v550 = vsel %vm444, %v547, %v549
          %v551 = vsel %vm444, %v549, %v547
          %v552 = vmul.f32 %v551, %v325
          %v553 = vmul.f32 %v550, %v326
          %554 = vrot.lane.b32.xlu0 %v539, 2
          %v555 = vpop.permute.xlu0 %554
          %556 = vrot.lane.b32.xlu0 %v543, 2
          %v557 = vpop.permute.xlu0 %556
          %v558 = vsel %vm453, %v555, %v557
          %v559 = vsel %vm453, %v557, %v555
          %v560 = vmul.f32 %v559, %v458
          %v561 = vmul.f32 %v558, %v459
          %562 = vrot.lane.b32.xlu0 %v539, 1
          %v563 = vpop.permute.xlu0 %562
          %564 = vrot.lane.b32.xlu0 %v543, 1
          %v565 = vpop.permute.xlu0 %564
          %v566 = vsel %vm468, %v563, %v565
          %v567 = vsel %vm468, %v565, %v563
          %v568 = vmul.f32 %v567, %v471
          %v569 = vmul.f32 %v566, %v472
          %v570 = vmul.f32 %v324, %v493
          %571 = vrot.lane.b32.xlu0 %v539, 127
          %v572 = vpop.permute.xlu0 %571
          %573 = vrot.lane.b32.xlu0 %v543, 127
          %v574 = vpop.permute.xlu0 %573
          %v575 = vsel %vm500, %v572, %v574
          %v576 = vsel %vm500, %v574, %v572
          %v577 = vmul.f32 %v575, %v503
          %v578 = vmul.f32 %v576, %v504
          %579 = vrot.lane.b32.xlu0 %v539, 126
          %v580 = vpop.permute.xlu0 %579
          %581 = vrot.lane.b32.xlu0 %v543, 126
          %v582 = vpop.permute.xlu0 %581
          %v583 = vsel %vm513, %v580, %v582
          %v584 = vsel %vm513, %v582, %v580
          %v585 = vmul.f32 %v583, %v516
          %v586 = vmul.f32 %v584, %v517
          %587 = vrot.lane.b32.xlu0 %v539, 125
          %v588 = vpop.permute.xlu0 %587
          %589 = vrot.lane.b32.xlu0 %v543, 125
          %v590 = vpop.permute.xlu0 %589
          %v591 = vsel %vm526, %v588, %v590
          %v592 = vsel %vm526, %v590, %v588
          %v593 = vmul.f32 %v591, %v529
          %v594 = vmul.f32 %v592, %v530
          %v595 = vstv %s329
          %v596 = vmul.f32 %v595, %v447
          %v597 = vmul.f32 %v595, %v448
          %v598 = vadd.f32 %v596, 0.0
          %v599 = vadd.f32 %v597, 0.0
          %v600 = vstv %s378
          %v601 = vmul.f32 %v600, %v552
          %v602 = vmul.f32 %v600, %v553
          %v603 = vadd.f32 %v598, %v601
          %v604 = vadd.f32 %v599, %v602
          %v605 = vstv %s330
          %v606 = vmul.f32 %v605, %v462
          %v607 = vmul.f32 %v605, %v463
          %v608 = vadd.f32 %v603, %v606
          %v609 = vadd.f32 %v604, %v607
          %v610 = vstv %s379
          %v611 = vmul.f32 %v610, %v560
          %v612 = vmul.f32 %v610, %v561
          %v613 = vadd.f32 %v608, %v611
          %v614 = vadd.f32 %v609, %v612
          %v615 = vstv %s331
          %v616 = vmul.f32 %v615, %v475
          %v617 = vmul.f32 %v615, %v476
          %v618 = vadd.f32 %v613, %v616
          %v619 = vadd.f32 %v614, %v617
          %v620 = vstv %s380
          %v621 = vmul.f32 %v620, %v568
          %v622 = vmul.f32 %v620, %v569
          %v623 = vadd.f32 %v618, %v621
          %v624 = vadd.f32 %v619, %v622
          %v625 = vstv %s332
          %v626 = vmul.f32 %v625, %v495
          %v628 = vlaneseq
          %v629 = vshrl.u32 %v628, 7
          %v630 = vsub.s32 0, %v629
          %v631 = vrot.slane %v626, %v630
          %v632 = vlaneseq
          %v633 = vshrl.u32 %v632, 7
          %v634 = vsub.s32 1, %v633
          %v635 = vrot.slane %v626, %v634
          %v638 = vadd.f32 %v623, %v631
          %v639 = vadd.f32 %v624, %v635
          %v640 = vstv %s381
          %v641 = vmul.f32 %v640, %v570
          %v643 = vlaneseq
          %v644 = vshrl.u32 %v643, 7
          %v645 = vsub.s32 0, %v644
          %v646 = vrot.slane %v641, %v645
          %v647 = vlaneseq
          %v648 = vshrl.u32 %v647, 7
          %v649 = vsub.s32 1, %v648
          %v650 = vrot.slane %v641, %v649
          %v653 = vadd.f32 %v638, %v646
          %v654 = vadd.f32 %v639, %v650
          %v655 = vstv %s333
          %v656 = vmul.f32 %v655, %v507
          %v657 = vmul.f32 %v655, %v508
          %v658 = vadd.f32 %v653, %v656
          %v659 = vadd.f32 %v654, %v657
          %v660 = vstv %s382
          %v661 = vmul.f32 %v660, %v577
          %v662 = vmul.f32 %v660, %v578
          %v663 = vadd.f32 %v658, %v661
          %v664 = vadd.f32 %v659, %v662
          %v665 = vstv %s334
          %v666 = vmul.f32 %v665, %v520
          %v667 = vmul.f32 %v665, %v521
          %v668 = vadd.f32 %v663, %v666
          %v669 = vadd.f32 %v664, %v667
          %v670 = vstv %s383
          %v671 = vmul.f32 %v670, %v585
          %v672 = vmul.f32 %v670, %v586
          %v673 = vadd.f32 %v668, %v671
          %v674 = vadd.f32 %v669, %v672
          %v675 = vstv %s335
          %v676 = vmul.f32 %v675, %v533
          %v677 = vmul.f32 %v675, %v534
          %v678 = vadd.f32 %v673, %v676
          %v679 = vadd.f32 %v674, %v677
          %v680 = vstv %s384
          %v681 = vmul.f32 %v680, %v593
          %v682 = vmul.f32 %v680, %v594
          %v683 = vadd.f32 %v678, %v681
          %v684 = vadd.f32 %v679, %v682
          %685 = vrot.lane.b32.xlu0 %v683, 48
          %v686 = vpop.permute.xlu0 %685
          %687 = vrot.lane.b32.xlu0 %v684, 48
          %v688 = vpop.permute.xlu0 %687
          %vm689 = vcmp.lt.s32.totalorder %v443, 48
          %v690 = vsel %vm689, %v686, %v688
          %v691 = vsel %vm689, %v688, %v686
          %v694 = vrot.slane %v691, 1
          %v695 = vrot.slane %v690, 1
          %v698 = vmul.f32 %v325, %v694
          %v699 = vmul.f32 %v326, %v695
          %v700 = vadd.f32 %v698, 0.0
          %v701 = vadd.f32 %v699, 0.0
          %v702 = vstv %s336
          %v703 = vmul.f32 %v702, %v447
          %v704 = vmul.f32 %v702, %v448
          %v705 = vadd.f32 %v703, 0.0
          %v706 = vadd.f32 %v704, 0.0
          %v707 = vstv %s385
          %v708 = vmul.f32 %v707, %v552
          %v709 = vmul.f32 %v707, %v553
          %v710 = vadd.f32 %v705, %v708
          %v711 = vadd.f32 %v706, %v709
          %v712 = vstv %s337
          %v713 = vmul.f32 %v712, %v462
          %v714 = vmul.f32 %v712, %v463
          %v715 = vadd.f32 %v710, %v713
          %v716 = vadd.f32 %v711, %v714
          %v717 = vstv %s386
          %v718 = vmul.f32 %v717, %v560
          %v719 = vmul.f32 %v717, %v561
          %v720 = vadd.f32 %v715, %v718
          %v721 = vadd.f32 %v716, %v719
          %v722 = vstv %s338
          %v723 = vmul.f32 %v722, %v475
          %v724 = vmul.f32 %v722, %v476
          %v725 = vadd.f32 %v720, %v723
          %v726 = vadd.f32 %v721, %v724
          %v727 = vstv %s387
          %v728 = vmul.f32 %v727, %v568
          %v729 = vmul.f32 %v727, %v569
          %v730 = vadd.f32 %v725, %v728
          %v731 = vadd.f32 %v726, %v729
          %v732 = vstv %s339
          %v733 = vmul.f32 %v732, %v495
          %v735 = vlaneseq
          %v736 = vshrl.u32 %v735, 7
          %v737 = vsub.s32 0, %v736
          %v738 = vrot.slane %v733, %v737
          %v739 = vlaneseq
          %v740 = vshrl.u32 %v739, 7
          %v741 = vsub.s32 1, %v740
          %v742 = vrot.slane %v733, %v741
          %v745 = vadd.f32 %v730, %v738
          %v746 = vadd.f32 %v731, %v742
          %v747 = vstv %s388
          %v748 = vmul.f32 %v747, %v570
          %v750 = vlaneseq
          %v751 = vshrl.u32 %v750, 7
          %v752 = vsub.s32 0, %v751
          %v753 = vrot.slane %v748, %v752
          %v754 = vlaneseq
          %v755 = vshrl.u32 %v754, 7
          %v756 = vsub.s32 1, %v755
          %v757 = vrot.slane %v748, %v756
          %v760 = vadd.f32 %v745, %v753
          %v761 = vadd.f32 %v746, %v757
          %v762 = vstv %s340
          %v763 = vmul.f32 %v762, %v507
          %v764 = vmul.f32 %v762, %v508
          %v765 = vadd.f32 %v760, %v763
          %v766 = vadd.f32 %v761, %v764
          %v767 = vstv %s389
          %v768 = vmul.f32 %v767, %v577
          %v769 = vmul.f32 %v767, %v578
          %v770 = vadd.f32 %v765, %v768
          %v771 = vadd.f32 %v766, %v769
          %v772 = vstv %s341
          %v773 = vmul.f32 %v772, %v520
          %v774 = vmul.f32 %v772, %v521
          %v775 = vadd.f32 %v770, %v773
          %v776 = vadd.f32 %v771, %v774
          %v777 = vstv %s390
          %v778 = vmul.f32 %v777, %v585
          %v779 = vmul.f32 %v777, %v586
          %v780 = vadd.f32 %v775, %v778
          %v781 = vadd.f32 %v776, %v779
          %v782 = vstv %s342
          %v783 = vmul.f32 %v782, %v533
          %v784 = vmul.f32 %v782, %v534
          %v785 = vadd.f32 %v780, %v783
          %v786 = vadd.f32 %v781, %v784
          %v787 = vstv %s391
          %v788 = vmul.f32 %v787, %v593
          %v789 = vmul.f32 %v787, %v594
          %v790 = vadd.f32 %v785, %v788
          %v791 = vadd.f32 %v786, %v789
          %792 = vrot.lane.b32.xlu0 %v790, 32
          %v793 = vpop.permute.xlu0 %792
          %794 = vrot.lane.b32.xlu0 %v791, 32
          %v795 = vpop.permute.xlu0 %794
          %vm796 = vcmp.lt.s32.totalorder %v443, 32
          %v797 = vsel %vm796, %v793, %v795
          %v798 = vsel %vm796, %v795, %v793
          %v799 = vmul.f32 %v327, %v798
          %v800 = vmul.f32 %v328, %v797
          %v803 = vrot.slane %v799, 1
          %v804 = vrot.slane %v800, 1
          %v807 = vadd.f32 %v700, %v803
          %v808 = vadd.f32 %v701, %v804
          %v809 = vstv %s343
          %v810 = vmul.f32 %v809, %v447
          %v811 = vmul.f32 %v809, %v448
          %v812 = vadd.f32 %v810, 0.0
          %v813 = vadd.f32 %v811, 0.0
          %v814 = vstv %s392
          %v815 = vmul.f32 %v814, %v552
          %v816 = vmul.f32 %v814, %v553
          %v817 = vadd.f32 %v812, %v815
          %v818 = vadd.f32 %v813, %v816
          %v819 = vstv %s344
          %v820 = vmul.f32 %v819, %v462
          %v821 = vmul.f32 %v819, %v463
          %v822 = vadd.f32 %v817, %v820
          %v823 = vadd.f32 %v818, %v821
          %v824 = vstv %s393
          %v825 = vmul.f32 %v824, %v560
          %v826 = vmul.f32 %v824, %v561
          %v827 = vadd.f32 %v822, %v825
          %v828 = vadd.f32 %v823, %v826
          %v829 = vstv %s345
          %v830 = vmul.f32 %v829, %v475
          %v831 = vmul.f32 %v829, %v476
          %v832 = vadd.f32 %v827, %v830
          %v833 = vadd.f32 %v828, %v831
          %v834 = vstv %s394
          %v835 = vmul.f32 %v834, %v568
          %v836 = vmul.f32 %v834, %v569
          %v837 = vadd.f32 %v832, %v835
          %v838 = vadd.f32 %v833, %v836
          %v839 = vstv %s346
          %v840 = vmul.f32 %v839, %v495
          %v842 = vlaneseq
          %v843 = vshrl.u32 %v842, 7
          %v844 = vsub.s32 0, %v843
          %v845 = vrot.slane %v840, %v844
          %v846 = vlaneseq
          %v847 = vshrl.u32 %v846, 7
          %v848 = vsub.s32 1, %v847
          %v849 = vrot.slane %v840, %v848
          %v852 = vadd.f32 %v837, %v845
          %v853 = vadd.f32 %v838, %v849
          %v854 = vstv %s395
          %v855 = vmul.f32 %v854, %v570
          %v857 = vlaneseq
          %v858 = vshrl.u32 %v857, 7
          %v859 = vsub.s32 0, %v858
          %v860 = vrot.slane %v855, %v859
          %v861 = vlaneseq
          %v862 = vshrl.u32 %v861, 7
          %v863 = vsub.s32 1, %v862
          %v864 = vrot.slane %v855, %v863
          %v867 = vadd.f32 %v852, %v860
          %v868 = vadd.f32 %v853, %v864
          %v869 = vstv %s347
          %v870 = vmul.f32 %v869, %v507
          %v871 = vmul.f32 %v869, %v508
          %v872 = vadd.f32 %v867, %v870
          %v873 = vadd.f32 %v868, %v871
          %v874 = vstv %s396
          %v875 = vmul.f32 %v874, %v577
          %v876 = vmul.f32 %v874, %v578
          %v877 = vadd.f32 %v872, %v875
          %v878 = vadd.f32 %v873, %v876
          %v879 = vstv %s348
          %v880 = vmul.f32 %v879, %v520
          %v881 = vmul.f32 %v879, %v521
          %v882 = vadd.f32 %v877, %v880
          %v883 = vadd.f32 %v878, %v881
          %v884 = vstv %s397
          %v885 = vmul.f32 %v884, %v585
          %v886 = vmul.f32 %v884, %v586
          %v887 = vadd.f32 %v882, %v885
          %v888 = vadd.f32 %v883, %v886
          %v889 = vstv %s349
          %v890 = vmul.f32 %v889, %v533
          %v891 = vmul.f32 %v889, %v534
          %v892 = vadd.f32 %v887, %v890
          %v893 = vadd.f32 %v888, %v891
          %v894 = vstv %s398
          %v895 = vmul.f32 %v894, %v593
          %v896 = vmul.f32 %v894, %v594
          %v897 = vadd.f32 %v892, %v895
          %v898 = vadd.f32 %v893, %v896
          %899 = vrot.lane.b32.xlu0 %v897, 16
          %v900 = vpop.permute.xlu0 %899
          %901 = vrot.lane.b32.xlu0 %v898, 16
          %v902 = vpop.permute.xlu0 %901
          %vm903 = vcmp.lt.s32.totalorder %v443, 16
          %v904 = vsel %vm903, %v900, %v902
          %v905 = vsel %vm903, %v902, %v900
          %v908 = vrot.slane %v905, 7
          %v909 = vrot.slane %v904, 7
          %v912 = vmul.f32 %v327, %v908
          %v913 = vmul.f32 %v328, %v909
          %v916 = vrot.slane %v912, 2
          %v917 = vrot.slane %v913, 2
          %v920 = vadd.f32 %v807, %v916
          %v921 = vadd.f32 %v808, %v917
          %v922 = vstv %s350
          %v923 = vmul.f32 %v922, %v447
          %v924 = vmul.f32 %v922, %v448
          %v925 = vadd.f32 %v923, 0.0
          %v926 = vadd.f32 %v924, 0.0
          %v927 = vstv %s399
          %v928 = vmul.f32 %v927, %v552
          %v929 = vmul.f32 %v927, %v553
          %v930 = vadd.f32 %v925, %v928
          %v931 = vadd.f32 %v926, %v929
          %v932 = vstv %s351
          %v933 = vmul.f32 %v932, %v462
          %v934 = vmul.f32 %v932, %v463
          %v935 = vadd.f32 %v930, %v933
          %v936 = vadd.f32 %v931, %v934
          %v937 = vstv %s400
          %v938 = vmul.f32 %v937, %v560
          %v939 = vmul.f32 %v937, %v561
          %v940 = vadd.f32 %v935, %v938
          %v941 = vadd.f32 %v936, %v939
          %v942 = vstv %s352
          %v943 = vmul.f32 %v942, %v475
          %v944 = vmul.f32 %v942, %v476
          %v945 = vadd.f32 %v940, %v943
          %v946 = vadd.f32 %v941, %v944
          %v947 = vstv %s401
          %v948 = vmul.f32 %v947, %v568
          %v949 = vmul.f32 %v947, %v569
          %v950 = vadd.f32 %v945, %v948
          %v951 = vadd.f32 %v946, %v949
          %v952 = vstv %s353
          %v953 = vmul.f32 %v952, %v495
          %v955 = vlaneseq
          %v956 = vshrl.u32 %v955, 7
          %v957 = vsub.s32 0, %v956
          %v958 = vrot.slane %v953, %v957
          %v959 = vlaneseq
          %v960 = vshrl.u32 %v959, 7
          %v961 = vsub.s32 1, %v960
          %v962 = vrot.slane %v953, %v961
          %v965 = vadd.f32 %v950, %v958
          %v966 = vadd.f32 %v951, %v962
          %v967 = vstv %s402
          %v968 = vmul.f32 %v967, %v570
          %v970 = vlaneseq
          %v971 = vshrl.u32 %v970, 7
          %v972 = vsub.s32 0, %v971
          %v973 = vrot.slane %v968, %v972
          %v974 = vlaneseq
          %v975 = vshrl.u32 %v974, 7
          %v976 = vsub.s32 1, %v975
          %v977 = vrot.slane %v968, %v976
          %v980 = vadd.f32 %v965, %v973
          %v981 = vadd.f32 %v966, %v977
          %v982 = vstv %s354
          %v983 = vmul.f32 %v982, %v507
          %v984 = vmul.f32 %v982, %v508
          %v985 = vadd.f32 %v980, %v983
          %v986 = vadd.f32 %v981, %v984
          %v987 = vstv %s403
          %v988 = vmul.f32 %v987, %v577
          %v989 = vmul.f32 %v987, %v578
          %v990 = vadd.f32 %v985, %v988
          %v991 = vadd.f32 %v986, %v989
          %v992 = vstv %s355
          %v993 = vmul.f32 %v992, %v520
          %v994 = vmul.f32 %v992, %v521
          %v995 = vadd.f32 %v990, %v993
          %v996 = vadd.f32 %v991, %v994
          %v997 = vstv %s404
          %v998 = vmul.f32 %v997, %v585
          %v999 = vmul.f32 %v997, %v586
          %v1000 = vadd.f32 %v995, %v998
          %v1001 = vadd.f32 %v996, %v999
          %v1002 = vstv %s356
          %v1003 = vmul.f32 %v1002, %v533
          %v1004 = vmul.f32 %v1002, %v534
          %v1005 = vadd.f32 %v1000, %v1003
          %v1006 = vadd.f32 %v1001, %v1004
          %v1007 = vstv %s405
          %v1008 = vmul.f32 %v1007, %v593
          %v1009 = vmul.f32 %v1007, %v594
          %v1010 = vadd.f32 %v1005, %v1008
          %v1011 = vadd.f32 %v1006, %v1009
          %v1014 = vrot.slane %v1010, 6
          %v1015 = vrot.slane %v1011, 6
          %v1018 = vmul.f32 %v327, %v1014
          %v1019 = vmul.f32 %v328, %v1015
          %v1022 = vrot.slane %v1018, 3
          %v1023 = vrot.slane %v1019, 3
          %v1026 = vadd.f32 %v920, %v1022
          %v1027 = vadd.f32 %v921, %v1023
          %v1028 = vstv %s357
          %v1029 = vmul.f32 %v1028, %v447
          %v1030 = vmul.f32 %v1028, %v448
          %v1031 = vadd.f32 %v1029, 0.0
          %v1032 = vadd.f32 %v1030, 0.0
          %v1033 = vstv %s406
          %v1034 = vmul.f32 %v1033, %v552
          %v1035 = vmul.f32 %v1033, %v553
          %v1036 = vadd.f32 %v1031, %v1034
          %v1037 = vadd.f32 %v1032, %v1035
          %v1038 = vstv %s358
          %v1039 = vmul.f32 %v1038, %v462
          %v1040 = vmul.f32 %v1038, %v463
          %v1041 = vadd.f32 %v1036, %v1039
          %v1042 = vadd.f32 %v1037, %v1040
          %v1043 = vstv %s407
          %v1044 = vmul.f32 %v1043, %v560
          %v1045 = vmul.f32 %v1043, %v561
          %v1046 = vadd.f32 %v1041, %v1044
          %v1047 = vadd.f32 %v1042, %v1045
          %v1048 = vstv %s359
          %v1049 = vmul.f32 %v1048, %v475
          %v1050 = vmul.f32 %v1048, %v476
          %v1051 = vadd.f32 %v1046, %v1049
          %v1052 = vadd.f32 %v1047, %v1050
          %v1053 = vstv %s408
          %v1054 = vmul.f32 %v1053, %v568
          %v1055 = vmul.f32 %v1053, %v569
          %v1056 = vadd.f32 %v1051, %v1054
          %v1057 = vadd.f32 %v1052, %v1055
          %v1058 = vstv %s360
          %v1059 = vmul.f32 %v1058, %v495
          %v1061 = vlaneseq
          %v1062 = vshrl.u32 %v1061, 7
          %v1063 = vsub.s32 0, %v1062
          %v1064 = vrot.slane %v1059, %v1063
          %v1065 = vlaneseq
          %v1066 = vshrl.u32 %v1065, 7
          %v1067 = vsub.s32 1, %v1066
          %v1068 = vrot.slane %v1059, %v1067
          %v1071 = vadd.f32 %v1056, %v1064
          %v1072 = vadd.f32 %v1057, %v1068
          %v1073 = vstv %s409
          %v1074 = vmul.f32 %v1073, %v570
          %v1076 = vlaneseq
          %v1077 = vshrl.u32 %v1076, 7
          %v1078 = vsub.s32 0, %v1077
          %v1079 = vrot.slane %v1074, %v1078
          %v1080 = vlaneseq
          %v1081 = vshrl.u32 %v1080, 7
          %v1082 = vsub.s32 1, %v1081
          %v1083 = vrot.slane %v1074, %v1082
          %v1086 = vadd.f32 %v1071, %v1079
          %v1087 = vadd.f32 %v1072, %v1083
          %v1088 = vstv %s361
          %v1089 = vmul.f32 %v1088, %v507
          %v1090 = vmul.f32 %v1088, %v508
          %v1091 = vadd.f32 %v1086, %v1089
          %v1092 = vadd.f32 %v1087, %v1090
          %v1093 = vstv %s410
          %v1094 = vmul.f32 %v1093, %v577
          %v1095 = vmul.f32 %v1093, %v578
          %v1096 = vadd.f32 %v1091, %v1094
          %v1097 = vadd.f32 %v1092, %v1095
          %v1098 = vstv %s362
          %v1099 = vmul.f32 %v1098, %v520
          %v1100 = vmul.f32 %v1098, %v521
          %v1101 = vadd.f32 %v1096, %v1099
          %v1102 = vadd.f32 %v1097, %v1100
          %v1103 = vstv %s411
          %v1104 = vmul.f32 %v1103, %v585
          %v1105 = vmul.f32 %v1103, %v586
          %v1106 = vadd.f32 %v1101, %v1104
          %v1107 = vadd.f32 %v1102, %v1105
          %v1108 = vstv %s363
          %v1109 = vmul.f32 %v1108, %v533
          %v1110 = vmul.f32 %v1108, %v534
          %v1111 = vadd.f32 %v1106, %v1109
          %v1112 = vadd.f32 %v1107, %v1110
          %v1113 = vstv %s412
          %v1114 = vmul.f32 %v1113, %v593
          %v1115 = vmul.f32 %v1113, %v594
          %v1116 = vadd.f32 %v1111, %v1114
          %v1117 = vadd.f32 %v1112, %v1115
          %1118 = vrot.lane.b32.xlu0 %v1116, 112
          %v1119 = vpop.permute.xlu0 %1118
          %1120 = vrot.lane.b32.xlu0 %v1117, 112
          %v1121 = vpop.permute.xlu0 %1120
          %vm1122 = vcmp.lt.s32.totalorder %v443, 112
          %v1123 = vsel %vm1122, %v1119, %v1121
          %v1124 = vsel %vm1122, %v1121, %v1119
          %v1127 = vrot.slane %v1123, 5
          %v1128 = vrot.slane %v1124, 5
          %v1131 = vmul.f32 %v327, %v1127
          %v1132 = vmul.f32 %v328, %v1128
          %v1135 = vrot.slane %v1131, 4
          %v1136 = vrot.slane %v1132, 4
          %v1139 = vadd.f32 %v1026, %v1135
          %v1140 = vadd.f32 %v1027, %v1136
          %v1141 = vstv %s364
          %v1142 = vmul.f32 %v1141, %v447
          %v1143 = vmul.f32 %v1141, %v448
          %v1144 = vadd.f32 %v1142, 0.0
          %v1145 = vadd.f32 %v1143, 0.0
          %v1146 = vstv %s413
          %v1147 = vmul.f32 %v1146, %v552
          %v1148 = vmul.f32 %v1146, %v553
          %v1149 = vadd.f32 %v1144, %v1147
          %v1150 = vadd.f32 %v1145, %v1148
          %v1151 = vstv %s365
          %v1152 = vmul.f32 %v1151, %v462
          %v1153 = vmul.f32 %v1151, %v463
          %v1154 = vadd.f32 %v1149, %v1152
          %v1155 = vadd.f32 %v1150, %v1153
          %v1156 = vstv %s414
          %v1157 = vmul.f32 %v1156, %v560
          %v1158 = vmul.f32 %v1156, %v561
          %v1159 = vadd.f32 %v1154, %v1157
          %v1160 = vadd.f32 %v1155, %v1158
          %v1161 = vstv %s366
          %v1162 = vmul.f32 %v1161, %v475
          %v1163 = vmul.f32 %v1161, %v476
          %v1164 = vadd.f32 %v1159, %v1162
          %v1165 = vadd.f32 %v1160, %v1163
          %v1166 = vstv %s415
          %v1167 = vmul.f32 %v1166, %v568
          %v1168 = vmul.f32 %v1166, %v569
          %v1169 = vadd.f32 %v1164, %v1167
          %v1170 = vadd.f32 %v1165, %v1168
          %v1171 = vstv %s367
          %v1172 = vmul.f32 %v1171, %v495
          %v1174 = vlaneseq
          %v1175 = vshrl.u32 %v1174, 7
          %v1176 = vsub.s32 0, %v1175
          %v1177 = vrot.slane %v1172, %v1176
          %v1178 = vlaneseq
          %v1179 = vshrl.u32 %v1178, 7
          %v1180 = vsub.s32 1, %v1179
          %v1181 = vrot.slane %v1172, %v1180
          %v1184 = vadd.f32 %v1169, %v1177
          %v1185 = vadd.f32 %v1170, %v1181
          %v1186 = vstv %s416
          %v1187 = vmul.f32 %v1186, %v570
          %v1189 = vlaneseq
          %v1190 = vshrl.u32 %v1189, 7
          %v1191 = vsub.s32 0, %v1190
          %v1192 = vrot.slane %v1187, %v1191
          %v1193 = vlaneseq
          %v1194 = vshrl.u32 %v1193, 7
          %v1195 = vsub.s32 1, %v1194
          %v1196 = vrot.slane %v1187, %v1195
          %v1199 = vadd.f32 %v1184, %v1192
          %v1200 = vadd.f32 %v1185, %v1196
          %v1201 = vstv %s368
          %v1202 = vmul.f32 %v1201, %v507
          %v1203 = vmul.f32 %v1201, %v508
          %v1204 = vadd.f32 %v1199, %v1202
          %v1205 = vadd.f32 %v1200, %v1203
          %v1206 = vstv %s417
          %v1207 = vmul.f32 %v1206, %v577
          %v1208 = vmul.f32 %v1206, %v578
          %v1209 = vadd.f32 %v1204, %v1207
          %v1210 = vadd.f32 %v1205, %v1208
          %v1211 = vstv %s369
          %v1212 = vmul.f32 %v1211, %v520
          %v1213 = vmul.f32 %v1211, %v521
          %v1214 = vadd.f32 %v1209, %v1212
          %v1215 = vadd.f32 %v1210, %v1213
          %v1216 = vstv %s418
          %v1217 = vmul.f32 %v1216, %v585
          %v1218 = vmul.f32 %v1216, %v586
          %v1219 = vadd.f32 %v1214, %v1217
          %v1220 = vadd.f32 %v1215, %v1218
          %v1221 = vstv %s370
          %v1222 = vmul.f32 %v1221, %v533
          %v1223 = vmul.f32 %v1221, %v534
          %v1224 = vadd.f32 %v1219, %v1222
          %v1225 = vadd.f32 %v1220, %v1223
          %v1226 = vstv %s419
          %v1227 = vmul.f32 %v1226, %v593
          %v1228 = vmul.f32 %v1226, %v594
          %v1229 = vadd.f32 %v1224, %v1227
          %v1230 = vadd.f32 %v1225, %v1228
          %1231 = vrot.lane.b32.xlu0 %v1229, 96
          %v1232 = vpop.permute.xlu0 %1231
          %1233 = vrot.lane.b32.xlu0 %v1230, 96
          %v1234 = vpop.permute.xlu0 %1233
          %vm1235 = vcmp.lt.s32.totalorder %v443, 96
          %v1236 = vsel %vm1235, %v1232, %v1234
          %v1237 = vsel %vm1235, %v1234, %v1232
          %v1240 = vrot.slane %v1236, 4
          %v1241 = vrot.slane %v1237, 4
          %v1244 = vmul.f32 %v327, %v1240
          %v1245 = vmul.f32 %v328, %v1241
          %v1248 = vrot.slane %v1244, 5
          %v1249 = vrot.slane %v1245, 5
          %v1252 = vadd.f32 %v1139, %v1248
          %v1253 = vadd.f32 %v1140, %v1249
          %v1254 = vstv %s371
          %v1255 = vmul.f32 %v1254, %v447
          %v1256 = vmul.f32 %v1254, %v448
          %v1257 = vadd.f32 %v1255, 0.0
          %v1258 = vadd.f32 %v1256, 0.0
          %v1259 = vstv %s420
          %v1260 = vmul.f32 %v1259, %v552
          %v1261 = vmul.f32 %v1259, %v553
          %v1262 = vadd.f32 %v1257, %v1260
          %v1263 = vadd.f32 %v1258, %v1261
          %v1264 = vstv %s372
          %v1265 = vmul.f32 %v1264, %v462
          %v1266 = vmul.f32 %v1264, %v463
          %v1267 = vadd.f32 %v1262, %v1265
          %v1268 = vadd.f32 %v1263, %v1266
          %v1269 = vstv %s421
          %v1270 = vmul.f32 %v1269, %v560
          %v1271 = vmul.f32 %v1269, %v561
          %v1272 = vadd.f32 %v1267, %v1270
          %v1273 = vadd.f32 %v1268, %v1271
          %v1274 = vstv %s373
          %v1275 = vmul.f32 %v1274, %v475
          %v1276 = vmul.f32 %v1274, %v476
          %v1277 = vadd.f32 %v1272, %v1275
          %v1278 = vadd.f32 %v1273, %v1276
          %v1279 = vstv %s422
          %v1280 = vmul.f32 %v1279, %v568
          %v1281 = vmul.f32 %v1279, %v569
          %v1282 = vadd.f32 %v1277, %v1280
          %v1283 = vadd.f32 %v1278, %v1281
          %v1284 = vstv %s374
          %v1285 = vmul.f32 %v1284, %v495
          %v1287 = vlaneseq
          %v1288 = vshrl.u32 %v1287, 7
          %v1289 = vsub.s32 0, %v1288
          %v1290 = vrot.slane %v1285, %v1289
          %v1291 = vlaneseq
          %v1292 = vshrl.u32 %v1291, 7
          %v1293 = vsub.s32 1, %v1292
          %v1294 = vrot.slane %v1285, %v1293
          %v1297 = vadd.f32 %v1282, %v1290
          %v1298 = vadd.f32 %v1283, %v1294
          %v1299 = vstv %s423
          %v1300 = vmul.f32 %v1299, %v570
          %v1302 = vlaneseq
          %v1303 = vshrl.u32 %v1302, 7
          %v1304 = vsub.s32 0, %v1303
          %v1305 = vrot.slane %v1300, %v1304
          %v1306 = vlaneseq
          %v1307 = vshrl.u32 %v1306, 7
          %v1308 = vsub.s32 1, %v1307
          %v1309 = vrot.slane %v1300, %v1308
          %v1312 = vadd.f32 %v1297, %v1305
          %v1313 = vadd.f32 %v1298, %v1309
          %v1314 = vstv %s375
          %v1315 = vmul.f32 %v1314, %v507
          %v1316 = vmul.f32 %v1314, %v508
          %v1317 = vadd.f32 %v1312, %v1315
          %v1318 = vadd.f32 %v1313, %v1316
          %v1319 = vstv %s424
          %v1320 = vmul.f32 %v1319, %v577
          %v1321 = vmul.f32 %v1319, %v578
          %v1322 = vadd.f32 %v1317, %v1320
          %v1323 = vadd.f32 %v1318, %v1321
          %v1324 = vstv %s376
          %v1325 = vmul.f32 %v1324, %v520
          %v1326 = vmul.f32 %v1324, %v521
          %v1327 = vadd.f32 %v1322, %v1325
          %v1328 = vadd.f32 %v1323, %v1326
          %v1329 = vstv %s425
          %v1330 = vmul.f32 %v1329, %v585
          %v1331 = vmul.f32 %v1329, %v586
          %v1332 = vadd.f32 %v1327, %v1330
          %v1333 = vadd.f32 %v1328, %v1331
          %v1334 = vstv %s377
          %v1335 = vmul.f32 %v1334, %v533
          %v1336 = vmul.f32 %v1334, %v534
          %v1337 = vadd.f32 %v1332, %v1335
          %v1338 = vadd.f32 %v1333, %v1336
          %v1339 = vstv %s426
          %v1340 = vmul.f32 %v1339, %v593
          %v1341 = vmul.f32 %v1339, %v594
          %v1342 = vadd.f32 %v1337, %v1340
          %v1343 = vadd.f32 %v1338, %v1341
          %1344 = vrot.lane.b32.xlu0 %v1342, 80
          %v1345 = vpop.permute.xlu0 %1344
          %1346 = vrot.lane.b32.xlu0 %v1343, 80
          %v1347 = vpop.permute.xlu0 %1346
          %vm1348 = vcmp.lt.s32.totalorder %v443, 80
          %v1349 = vsel %vm1348, %v1345, %v1347
          %v1350 = vsel %vm1348, %v1347, %v1345
          %v1353 = vrot.slane %v1349, 3
          %v1354 = vrot.slane %v1350, 3
          %v1357 = vmul.f32 %v327, %v1353
          %v1358 = vmul.f32 %v328, %v1354
          %v1361 = vrot.slane %v1357, 6
          %v1362 = vrot.slane %v1358, 6
          %v1365 = vadd.f32 %v1252, %v1361
          %v1366 = vadd.f32 %v1253, %v1362
          %v1367 = vxor.u32 %v1365, 2147483648
          %v1368 = vxor.u32 %v1366, 2147483648
          %v1369 = vmul.f32 %v1367, 1.442695
          %v1370 = vpow.pop %v1369
          %v1371 = vmul.f32 %v1368, 1.442695
          %v1372 = vpow.pop %v1371
          %v1373 = vadd.f32 %v1370, 1.0
          %v1374 = vadd.f32 %v1372, 1.0
          %v1375 = vrcp.pop %v1373
          %v1376 = vmul.f32 1.0, %v1375
          %v1377 = vrcp.pop %v1374
          %v1378 = vmul.f32 1.0, %v1377
          %v1381 = vcombine.high %v1376, %v1378
          %v1383 = vunpack.c.l.s4 1966171168
          %v1384 = vunpack.c.0.s8 %v1383
          %v1385 = vlaneseq
          %v1386 = vshrl.u32 %v1385, 7
          %v1387 = vsub.s32 %v1384, %v1386
          %v1388 = vrot.slane %v1381, %v1387
          %v1389 = vcombine.high %v1388, %v1388
          %v1391 = vunpack.c.l.s4 1966171168
          %v1392 = vunpack.c.0.s8 %v1391
          %v1393 = vlaneseq
          %v1394 = vshrl.u32 %v1393, 7
          %v1395 = vsub.s32 %v1392, %v1394
          %v1396 = vrot.slane %v1389, %v1395
          %v1397 = vcombine.high %v1396, %v1396
          %1399 = vst.msk [vmem:[%s229] sm:$0x3] %vm282, %v1397
        $region52: #{tpu_custom_call.1} parent=31 // pred_fallthru
          _
        %s1400 = sand.u32 %s112, 1
        %s1401 = scalar_lea.sflag [#allocation6], %s1400
        %s1402 = sand.u32 %s112, 1
        %s1403 = smul.addr %s1402, 2
        %s1404 = scalar_lea.vmem [#allocation11], %s1403
        // Predicated region
        $region53: #{tpu_custom_call.1} parent=31 // pred_check
          %p1405 = pneg %p122
        $region54: #{tpu_custom_call.1} parent=31 // pred_check_branch
          %1407 = sbr.rel (%p1405) target = $region56
        $region55: #{tpu_custom_call.1} parent=31 // pred_region
          %s1409 = ssub.s32 32, 32
          %1410 = vsyncadd %s1401, %s1409
          %s1411 = smul.addr %s26, 2
          %s1412 = smul.addr %s1411, 16
          %s1413 = scalar_lea.hbm %s3, %s1412
          %s1415 = sshll.u32 %s1404, 4
          %s1416 = int_to_ptr.vmem [resolvable:$true] %s1415
          %1418 = dma.vmem_to_hbm [thread:$0]  %s1416, 32, %s1413, %s1401
        $region56: #{tpu_custom_call.1} parent=31 // pred_fallthru
          _
      $region32: #{tpu_custom_call.1} parent=5 // pred_fallthru
        _
      %p1419 = scmp.le.s32.totalorder 2, %s17
      // Predicated region
      $region57: #{tpu_custom_call.1} parent=5 // pred_check
        %p1420 = pneg %p1419
      $region58: #{tpu_custom_call.1} parent=5 // pred_check_branch
        %1422 = sbr.rel (%p1420) target = $region60
      $region59: #{tpu_custom_call.1} parent=5 // pred_region
        %s1423 = ssub.s32 %s17, 2
        // Predicated region
        $region61: #{tpu_custom_call.1} parent=59 // pred_check
          %p1424 = pneg %p128
        $region62: #{tpu_custom_call.1} parent=59 // pred_check_branch
          %1426 = sbr.rel (%p1424) target = $region64
        $region63: #{tpu_custom_call.1} parent=59 // pred_region
          %s1427 = sand.u32 %s113, 1
          %s1428 = scalar_lea.sflag [#allocation6], %s1427
          %s1429 = sand.u32 %s113, 1
          %s1430 = smul.addr %s1429, 2
          %s1431 = scalar_lea.vmem [#allocation11], %s1430
          %1432 = dma.done %s1428, 32
        $region64: #{tpu_custom_call.1} parent=59 // pred_fallthru
          _
      $region60: #{tpu_custom_call.1} parent=5 // pred_fallthru
        _
    $region6: #{tpu_custom_call.1} parent=1 // loop_footer
      %s21 = sadd.s32 1, %s17
    $region7: #{tpu_custom_call.1} parent=1 // loop_footer_branch
      %16 = sbr.rel target = $region3
    $region8: #{tpu_custom_call.1} parent=1 // loop_exit
      _
    %1433 = vsyncpa [#allocation5], 1
    %s1434 = scalar_lea.sflag [#allocation5], 1
    %1435 = vsyncpa %s1434, 1
    %1436 = vsyncpa [#allocation10], 1
    %s1437 = scalar_lea.sflag [#allocation10], 1
    %1438 = vsyncpa %s1437, 1
    %1439 = vsyncpa [#allocation6], 1
    %s1440 = scalar_lea.sflag [#allocation6], 1
    %1441 = vsyncpa %s1440, 1
    %1442 = vsyncpa [#allocation7], 1
    %s1443 = scalar_lea.sflag [#allocation7], 1
    %1444 = vsyncpa %s1443, 1

</llo_original>
